<compile_context>
chip_gen: v5e
topology: v5e:2x2
jax: 0.10.0
libtpu: 0.0.40
codegen_flags: <defaults>
</compile_context>

<pallas_src>
import jax
import jax.numpy as jnp
from jax.experimental import pallas as pl
from jax.experimental.pallas import tpu as pltpu

# ---- Shapes consistent with the module --------------------------------------
BATCH = 2
IN_C, IN_H, IN_W = 4, 16, 16           # input_shape = (C, H, W)
D_IN = IN_C * IN_H * IN_W              # 1024
HIDDEN = 15 * 20                       # 300 real Hebbian units
HIDDEN_PAD = 384                       # 3 * 128 lanes (lane-dense intermediates)
NUM_CLASSES = 10                       # P.NUM_CLASSES
NUM_CLASSES_PAD = 128                  # lane-dense output, sliced to 10 outside
COS_EPS = 1e-8                         # eps in cosine-similarity denominator
BN_EPS = 1e-5                          # nn.BatchNorm2d default eps

# Row layout of the packed aux array (6, HIDDEN_PAD):
ROW_W1N, ROW_W2N, ROW_G1, ROW_B1, ROW_G2, ROW_B2 = range(6)


# ---- In-kernel math helpers --------------------------------------------------
def _clp_cos_sim(x, w_f32, w_norm):
    """max(0, x.w_k / (||x|| ||w_k|| + eps)) with precomputed ||w_k||."""
    dot = jnp.dot(x, w_f32, preferred_element_type=jnp.float32)        # (N, Hp)
    x_norm = jnp.sqrt(jnp.sum(x * x, axis=-1, keepdims=True))          # (N, 1)
    inv = pl.reciprocal(x_norm * w_norm + COS_EPS, approx=False)       # EUP
    return jnp.maximum(dot * inv, 0.0)


def _batchnorm(h, gamma, beta):
    """BatchNorm2d (training mode); spatial dims are 1x1 so stats are over batch."""
    mu = jnp.mean(h, axis=0, keepdims=True)                            # (1, Hp)
    var = jnp.mean((h - mu) ** 2, axis=0, keepdims=True)               # biased var
    return (h - mu) * jax.lax.rsqrt(var + BN_EPS) * gamma + beta


# ---- Fused forward kernel ----------------------------------------------------
def net_kernel(x_ref, w1_ref, w2_ref, w3_ref, aux_ref, out_ref):
    x = x_ref[...]                                                     # (N, D_IN) f32
    aux = aux_ref[...]                                                 # (6, Hp)  f32
    w1n = aux[ROW_W1N:ROW_W1N + 1, :]
    w2n = aux[ROW_W2N:ROW_W2N + 1, :]
    g1 = aux[ROW_G1:ROW_G1 + 1, :]
    b1 = aux[ROW_B1:ROW_B1 + 1, :]
    g2 = aux[ROW_G2:ROW_G2 + 1, :]
    b2 = aux[ROW_B2:ROW_B2 + 1, :]

    # fc1 + bn1  (w1 shipped as bf16, cast once in VMEM, accumulate f32)
    h1 = _clp_cos_sim(x, w1_ref[...].astype(jnp.float32), w1n)         # (N, Hp)
    h1 = _batchnorm(h1, g1, b1)

    # fc2 + bn2
    h2 = _clp_cos_sim(h1, w2_ref[...].astype(jnp.float32), w2n)        # (N, Hp)
    h2 = _batchnorm(h2, g2, b2)

    # fc3: plain dot product (non-competitive HebbianMap2d, default out)
    out_ref[...] = jnp.dot(h2, w3_ref[...],
                           preferred_element_type=jnp.float32)         # (N, Cp)


def net_forward(x_nchw, params):
    """Flatten NCHW input and run the fused Pallas kernel."""
    n = x_nchw.shape[0]
    assert n >= 2, "BatchNorm in training mode needs batch size >= 2"
    x2d = x_nchw.reshape(n, D_IN).astype(jnp.float32)

    flops = 2 * n * (D_IN * HIDDEN_PAD + HIDDEN_PAD * HIDDEN_PAD
                     + HIDDEN_PAD * NUM_CLASSES_PAD)
    bytes_accessed = (x2d.size * 4
                      + params["w1"].size * 2 + params["w2"].size * 2
                      + params["w3"].size * 4 + params["aux"].size * 4
                      + n * NUM_CLASSES_PAD * 4)
    cost = pl.CostEstimate(flops=flops,
                           transcendentals=2 * n * HIDDEN_PAD,
                           bytes_accessed=bytes_accessed)

    vmem = pl.BlockSpec(memory_space=pltpu.MemorySpace.VMEM)
    out_pad = pl.pallas_call(
        net_kernel,
        out_shape=jax.ShapeDtypeStruct((n, NUM_CLASSES_PAD), jnp.float32),
        in_specs=[vmem] * 5,
        out_specs=vmem,
        cost_estimate=cost,
    )(x2d, params["w1"], params["w2"], params["w3"], params["aux"])

    return {"fc3": out_pad[:, :NUM_CLASSES]}


# ---- Pure-JAX reference (unpadded, same quantized weights) -------------------
def net_reference(x_nchw, params):
    x = x_nchw.reshape(x_nchw.shape[0], D_IN).astype(jnp.float32)

    def clp_cos(xv, w):
        dot = xv @ w
        xn = jnp.linalg.norm(xv, axis=-1, keepdims=True)
        wn = jnp.linalg.norm(w, axis=0, keepdims=True)
        return jnp.maximum(dot / (xn * wn + COS_EPS), 0.0)

    def bn(h):
        mu = jnp.mean(h, axis=0, keepdims=True)
        var = jnp.mean((h - mu) ** 2, axis=0, keepdims=True)
        return (h - mu) / jnp.sqrt(var + BN_EPS)          # gamma=1, beta=0

    h1 = bn(clp_cos(x, params["w1_ref"]))
    h2 = bn(clp_cos(h1, params["w2_ref"]))
    return h2 @ params["w3_ref"]


# ---- Deterministic parameter init -------------------------------------------
def init_params(key):
    k1, k2, k3 = jax.random.split(key, 3)
    w1 = jax.random.normal(k1, (D_IN, HIDDEN), jnp.float32) * 0.05
    w2 = jax.random.normal(k2, (HIDDEN, HIDDEN), jnp.float32) * 0.05
    w3 = jax.random.normal(k3, (HIDDEN, NUM_CLASSES), jnp.float32) * 0.05

    # bf16 storage for the two big filter banks (halves DMA bytes).
    w1_q = w1.astype(jnp.bfloat16)
    w2_q = w2.astype(jnp.bfloat16)

    # Zero-pad to lane-dense widths. Padded columns have ||w||=0 -> cos=0 ->
    # stay exactly 0 through BN; padded rows of w2/w3 contribute nothing.
    w1_pad = jnp.zeros((D_IN, HIDDEN_PAD), jnp.bfloat16).at[:, :HIDDEN].set(w1_q)
    w2_pad = jnp.zeros((HIDDEN_PAD, HIDDEN_PAD), jnp.bfloat16).at[:HIDDEN, :HIDDEN].set(w2_q)
    w3_pad = jnp.zeros((HIDDEN_PAD, NUM_CLASSES_PAD), jnp.float32).at[:HIDDEN, :NUM_CLASSES].set(w3)

    # Precomputed filter norms (batch-independent; hoisted out of the kernel).
    w1n = jnp.linalg.norm(w1_pad.astype(jnp.float32), axis=0)           # (Hp,)
    w2n = jnp.linalg.norm(w2_pad.astype(jnp.float32), axis=0)           # (Hp,)

    gamma = jnp.ones((HIDDEN_PAD,), jnp.float32)                        # PyTorch default
    beta = jnp.zeros((HIDDEN_PAD,), jnp.float32)
    aux = jnp.stack([w1n, w2n, gamma, beta, gamma, beta], axis=0)       # (6, Hp)

    return {
        "w1": w1_pad, "w2": w2_pad, "w3": w3_pad, "aux": aux,
        # f32 views of the same (quantized) weights for the reference check.
        "w1_ref": w1_q.astype(jnp.float32),
        "w2_ref": w2_q.astype(jnp.float32),
        "w3_ref": w3,
    }


if __name__ == "__main__":
    key = jax.random.PRNGKey(0)
    kx, kp = jax.random.split(key)
    x = jax.random.normal(kx, (BATCH, IN_C, IN_H, IN_W), jnp.float32)
    params = init_params(kp)

    out = net_forward(x, params)
    fc3 = jax.block_until_ready(out["fc3"])
    assert fc3.shape == (BATCH, NUM_CLASSES), fc3.shape

    ref = jax.block_until_ready(net_reference(x, params))
    assert jnp.allclose(fc3, ref, atol=1e-3, rtol=1e-3), (
        f"max abs err {jnp.max(jnp.abs(fc3 - ref))}")

    print("KERNEL_OK")
</pallas_src>

<mosaic_0001>
module attributes {stable_mosaic.version = 11 : i64} {
  func.func @net_kernel(%arg0: memref<2x1024xf32, #tpu.memory_space<vmem>>, %arg1: memref<1024x384xbf16, #tpu.memory_space<vmem>>, %arg2: memref<384x384xbf16, #tpu.memory_space<vmem>>, %arg3: memref<384x128xf32, #tpu.memory_space<vmem>>, %arg4: memref<6x384xf32, #tpu.memory_space<vmem>>, %arg5: memref<2x128xf32, #tpu.memory_space<vmem>>) attributes {dimension_semantics = [], scalar_prefetch = 0 : i64, scratch_operands = 0 : i64, tpu.core_type = #tpu.core_type<tc>} {
    %c0 = arith.constant 0 : index
    %c0_0 = arith.constant 0 : index
    %0 = vector.load %arg0[%c0, %c0_0] : memref<2x1024xf32, #tpu.memory_space<vmem>>, vector<2x1024xf32>
    %c0_1 = arith.constant 0 : index
    %c0_2 = arith.constant 0 : index
    %1 = vector.load %arg4[%c0_1, %c0_2] : memref<6x384xf32, #tpu.memory_space<vmem>>, vector<6x384xf32>
    %2 = vector.extract_strided_slice %1 {offsets = [0, 0], sizes = [1, 384], strides = [1, 1]} : vector<6x384xf32> to vector<1x384xf32>
    %3 = vector.extract_strided_slice %1 {offsets = [1, 0], sizes = [1, 384], strides = [1, 1]} : vector<6x384xf32> to vector<1x384xf32>
    %4 = vector.extract_strided_slice %1 {offsets = [2, 0], sizes = [1, 384], strides = [1, 1]} : vector<6x384xf32> to vector<1x384xf32>
    %5 = vector.extract_strided_slice %1 {offsets = [3, 0], sizes = [1, 384], strides = [1, 1]} : vector<6x384xf32> to vector<1x384xf32>
    %6 = vector.extract_strided_slice %1 {offsets = [4, 0], sizes = [1, 384], strides = [1, 1]} : vector<6x384xf32> to vector<1x384xf32>
    %7 = vector.extract_strided_slice %1 {offsets = [5, 0], sizes = [1, 384], strides = [1, 1]} : vector<6x384xf32> to vector<1x384xf32>
    %c0_3 = arith.constant 0 : index
    %c0_4 = arith.constant 0 : index
    %8 = vector.load %arg1[%c0_3, %c0_4] : memref<1024x384xbf16, #tpu.memory_space<vmem>>, vector<1024x384xbf16>
    %9 = arith.extf %8 : vector<1024x384xbf16> to vector<1024x384xf32>
    %cst = arith.constant dense<0.000000e+00> : vector<2x384xf32>
    %10 = tpu.matmul %0, %9, %cst {dimension_numbers = #tpu.dot_dimension_numbers<[1], [0], [0], [1], [0, 0, 1, 1], [], []>} : vector<2x1024xf32>, vector<1024x384xf32>, vector<2x384xf32> -> vector<2x384xf32>
    %11 = arith.mulf %0, %0 : vector<2x1024xf32>
    %cst_5 = arith.constant dense<0.000000e+00> : vector<2xf32>
    %12 = vector.multi_reduction <add>, %11, %cst_5 [1] : vector<2x1024xf32> to vector<2xf32>
    %13 = vector.shape_cast %12 : vector<2xf32> to vector<2x1xf32>
    %14 = math.sqrt %13 : vector<2x1xf32>
    %15 = vector.broadcast %14 : vector<2x1xf32> to vector<2x384xf32>
    %16 = vector.broadcast %2 : vector<1x384xf32> to vector<2x384xf32>
    %17 = arith.mulf %15, %16 : vector<2x384xf32>
    %cst_6 = arith.constant 9.99999993E-9 : f32
    %18 = vector.broadcast %cst_6 : f32 to vector<2x384xf32>
    %19 = arith.addf %17, %18 : vector<2x384xf32>
    %20 = tpu.reciprocal %19 : vector<2x384xf32> -> vector<2x384xf32>
    %21 = arith.mulf %10, %20 : vector<2x384xf32>
    %cst_7 = arith.constant 0.000000e+00 : f32
    %22 = vector.broadcast %cst_7 : f32 to vector<2x384xf32>
    %23 = arith.maximumf %21, %22 : vector<2x384xf32>
    %cst_8 = arith.constant dense<0.000000e+00> : vector<384xf32>
    %24 = vector.multi_reduction <add>, %23, %cst_8 [0] : vector<2x384xf32> to vector<384xf32>
    %25 = vector.shape_cast %24 : vector<384xf32> to vector<1x384xf32>
    %cst_9 = arith.constant 2.000000e+00 : f32
    %26 = vector.broadcast %cst_9 : f32 to vector<1x384xf32>
    %27 = arith.divf %25, %26 : vector<1x384xf32>
    %28 = vector.broadcast %27 : vector<1x384xf32> to vector<2x384xf32>
    %29 = arith.subf %23, %28 : vector<2x384xf32>
    %30 = arith.mulf %29, %29 : vector<2x384xf32>
    %cst_10 = arith.constant dense<0.000000e+00> : vector<384xf32>
    %31 = vector.multi_reduction <add>, %30, %cst_10 [0] : vector<2x384xf32> to vector<384xf32>
    %32 = vector.shape_cast %31 : vector<384xf32> to vector<1x384xf32>
    %cst_11 = arith.constant 2.000000e+00 : f32
    %33 = vector.broadcast %cst_11 : f32 to vector<1x384xf32>
    %34 = arith.divf %32, %33 : vector<1x384xf32>
    %35 = vector.broadcast %27 : vector<1x384xf32> to vector<2x384xf32>
    %36 = arith.subf %23, %35 : vector<2x384xf32>
    %cst_12 = arith.constant 9.99999974E-6 : f32
    %37 = vector.broadcast %cst_12 : f32 to vector<1x384xf32>
    %38 = arith.addf %34, %37 : vector<1x384xf32>
    %39 = math.rsqrt %38 : vector<1x384xf32>
    %40 = vector.broadcast %39 : vector<1x384xf32> to vector<2x384xf32>
    %41 = arith.mulf %36, %40 : vector<2x384xf32>
    %42 = vector.broadcast %4 : vector<1x384xf32> to vector<2x384xf32>
    %43 = arith.mulf %41, %42 : vector<2x384xf32>
    %44 = vector.broadcast %5 : vector<1x384xf32> to vector<2x384xf32>
    %45 = arith.addf %43, %44 : vector<2x384xf32>
    %c0_13 = arith.constant 0 : index
    %c0_14 = arith.constant 0 : index
    %46 = vector.load %arg2[%c0_13, %c0_14] : memref<384x384xbf16, #tpu.memory_space<vmem>>, vector<384x384xbf16>
    %47 = arith.extf %46 : vector<384x384xbf16> to vector<384x384xf32>
    %cst_15 = arith.constant dense<0.000000e+00> : vector<2x384xf32>
    %48 = tpu.matmul %45, %47, %cst_15 {dimension_numbers = #tpu.dot_dimension_numbers<[1], [0], [0], [1], [0, 0, 1, 1], [], []>} : vector<2x384xf32>, vector<384x384xf32>, vector<2x384xf32> -> vector<2x384xf32>
    %49 = arith.mulf %45, %45 : vector<2x384xf32>
    %cst_16 = arith.constant dense<0.000000e+00> : vector<2xf32>
    %50 = vector.multi_reduction <add>, %49, %cst_16 [1] : vector<2x384xf32> to vector<2xf32>
    %51 = vector.shape_cast %50 : vector<2xf32> to vector<2x1xf32>
    %52 = math.sqrt %51 : vector<2x1xf32>
    %53 = vector.broadcast %52 : vector<2x1xf32> to vector<2x384xf32>
    %54 = vector.broadcast %3 : vector<1x384xf32> to vector<2x384xf32>
    %55 = arith.mulf %53, %54 : vector<2x384xf32>
    %cst_17 = arith.constant 9.99999993E-9 : f32
    %56 = vector.broadcast %cst_17 : f32 to vector<2x384xf32>
    %57 = arith.addf %55, %56 : vector<2x384xf32>
    %58 = tpu.reciprocal %57 : vector<2x384xf32> -> vector<2x384xf32>
    %59 = arith.mulf %48, %58 : vector<2x384xf32>
    %cst_18 = arith.constant 0.000000e+00 : f32
    %60 = vector.broadcast %cst_18 : f32 to vector<2x384xf32>
    %61 = arith.maximumf %59, %60 : vector<2x384xf32>
    %cst_19 = arith.constant dense<0.000000e+00> : vector<384xf32>
    %62 = vector.multi_reduction <add>, %61, %cst_19 [0] : vector<2x384xf32> to vector<384xf32>
    %63 = vector.shape_cast %62 : vector<384xf32> to vector<1x384xf32>
    %cst_20 = arith.constant 2.000000e+00 : f32
    %64 = vector.broadcast %cst_20 : f32 to vector<1x384xf32>
    %65 = arith.divf %63, %64 : vector<1x384xf32>
    %66 = vector.broadcast %65 : vector<1x384xf32> to vector<2x384xf32>
    %67 = arith.subf %61, %66 : vector<2x384xf32>
    %68 = arith.mulf %67, %67 : vector<2x384xf32>
    %cst_21 = arith.constant dense<0.000000e+00> : vector<384xf32>
    %69 = vector.multi_reduction <add>, %68, %cst_21 [0] : vector<2x384xf32> to vector<384xf32>
    %70 = vector.shape_cast %69 : vector<384xf32> to vector<1x384xf32>
    %cst_22 = arith.constant 2.000000e+00 : f32
    %71 = vector.broadcast %cst_22 : f32 to vector<1x384xf32>
    %72 = arith.divf %70, %71 : vector<1x384xf32>
    %73 = vector.broadcast %65 : vector<1x384xf32> to vector<2x384xf32>
    %74 = arith.subf %61, %73 : vector<2x384xf32>
    %cst_23 = arith.constant 9.99999974E-6 : f32
    %75 = vector.broadcast %cst_23 : f32 to vector<1x384xf32>
    %76 = arith.addf %72, %75 : vector<1x384xf32>
    %77 = math.rsqrt %76 : vector<1x384xf32>
    %78 = vector.broadcast %77 : vector<1x384xf32> to vector<2x384xf32>
    %79 = arith.mulf %74, %78 : vector<2x384xf32>
    %80 = vector.broadcast %6 : vector<1x384xf32> to vector<2x384xf32>
    %81 = arith.mulf %79, %80 : vector<2x384xf32>
    %82 = vector.broadcast %7 : vector<1x384xf32> to vector<2x384xf32>
    %83 = arith.addf %81, %82 : vector<2x384xf32>
    %c0_24 = arith.constant 0 : index
    %c0_25 = arith.constant 0 : index
    %84 = vector.load %arg3[%c0_24, %c0_25] : memref<384x128xf32, #tpu.memory_space<vmem>>, vector<384x128xf32>
    %cst_26 = arith.constant dense<0.000000e+00> : vector<2x128xf32>
    %85 = tpu.matmul %83, %84, %cst_26 {dimension_numbers = #tpu.dot_dimension_numbers<[1], [0], [0], [1], [0, 0, 1, 1], [], []>} : vector<2x384xf32>, vector<384x128xf32>, vector<2x128xf32> -> vector<2x128xf32>
    %c0_27 = arith.constant 0 : index
    %c0_28 = arith.constant 0 : index
    %86 = vector.load %arg5[%c0_27, %c0_28] : memref<2x128xf32, #tpu.memory_space<vmem>>, vector<2x128xf32>
    tpu.vector_store %arg5[%c0_27, %c0_28], %85 {strides = array<i32>} : memref<2x128xf32, #tpu.memory_space<vmem>>, vector<2x128xf32>,
    return
  }
}

</mosaic_0001>

<llo_original>
// kernel: tpu_custom_call.1
$region0: #{tpu_custom_call.1}
  #allocation0 [shape = 'u32[]', space=smem, size = 0x4, offset = 0x4, fixed_abs, tag = 'smem constant byte address 0x4 - core index']
  #allocation1 [shape = 'u32[72,128]{1,0:T(1,128)}', space=vmem, size = 0x9000, scoped, tag = 'internal scratch']
  %s0 = inlined_call_operand.hbm [shape: f32[2,1024], index: 0, kind: input, shape index: {}]
  %s1 = inlined_call_operand.hbm [shape: bf16[1024,384], index: 1, kind: input, shape index: {}]
  %s2 = inlined_call_operand.hbm [shape: bf16[384,384], index: 2, kind: input, shape index: {}]
  %s3 = inlined_call_operand.hbm [shape: f32[384,128], index: 3, kind: input, shape index: {}]
  %s4 = inlined_call_operand.hbm [shape: f32[6,384], index: 4, kind: input, shape index: {}]
  %s5 = inlined_call_operand.hbm [shape: f32[2,128], index: 5, kind: output, shape index: {}]
  %s6 = sld [smem:[#allocation0]]
  $region50: #{tpu_custom_call.1} parent=0
    _
  %s8 = ssub.s32 1, %s6
  %s9 = scalar_select 0, %s8, %s6
  $region1: #{tpu_custom_call.1} parent=0
    #allocation2 [shape = 'u8[8192]{0}', space=vmem, size = 0x2000, scoped, tag = 'input window, operand 0, single buffered']
    #allocation3 [shape = 's32[1]{0}', space=sflag, size = 0x4, scoped, tag = 'scoped memory for tpu_custom_call.1']
    #allocation4 [shape = 's32[1]{0}', space=sflag, size = 0x4, scoped, tag = 'scoped memory for tpu_custom_call.1']
    #allocation5 [shape = 'u8[786432]{0}', space=vmem, size = 0xc0000, scoped, tag = 'input window, operand 1, single buffered']
    #allocation6 [shape = 's32[1]{0}', space=sflag, size = 0x4, scoped, tag = 'scoped memory for tpu_custom_call.1']
    #allocation7 [shape = 'u8[294912]{0}', space=vmem, size = 0x48000, scoped, tag = 'input window, operand 2, single buffered']
    #allocation8 [shape = 'u8[196608]{0}', space=vmem, size = 0x30000, scoped, tag = 'input window, operand 3, single buffered']
    #allocation9 [shape = 's32[1]{0}', space=sflag, size = 0x4, scoped, tag = 'scoped memory for tpu_custom_call.1']
    #allocation10 [shape = 'u8[12288]{0}', space=vmem, size = 0x3000, scoped, tag = 'input window, operand 4, single buffered']
    #allocation11 [shape = 'u8[1024]{0}', space=vmem, size = 0x400, scoped, tag = 'output window, operand 0, single buffered']
    %10 = vsyncpa [#allocation3], 0
    %11 = vsyncpa [#allocation6], 0
    %12 = vsyncpa [#allocation9], 0
    %13 = vsyncpa [#allocation4], 0
    // Predicated region
    $region2: #{tpu_custom_call.1} parent=1 // pred_check
      _
    $region3: #{tpu_custom_call.1} parent=1 // pred_check_branch
      %15 = sbr.rel (0) target = $region5
    $region4: #{tpu_custom_call.1} parent=1 // pred_region
      %17 = vsyncadd [#allocation3], 0
      %s19 = sshll.u32 %s0, 4
      %s20 = int_to_ptr.hbm [resolvable:$true] %s19
      %s21 = sshll.u32 [#allocation2], 4
      %s22 = int_to_ptr.vmem [resolvable:$true] %s21
      %24 = dma.hbm_to_vmem [thread:$0]  %s20, 256, %s22, [#allocation3]
    $region5: #{tpu_custom_call.1} parent=1 // pred_fallthru
      _
    // Predicated region
    $region6: #{tpu_custom_call.1} parent=1 // pred_check
      _
    $region7: #{tpu_custom_call.1} parent=1 // pred_check_branch
      %26 = sbr.rel (0) target = $region9
    $region8: #{tpu_custom_call.1} parent=1 // pred_region
      %28 = vsyncadd [#allocation6], 0
      %s29 = sshll.u32 %s1, 4
      %s30 = int_to_ptr.hbm [resolvable:$true] %s29
      %s31 = sshll.u32 [#allocation5], 4
      %s32 = int_to_ptr.vmem [resolvable:$true] %s31
      %37 = dma.hbm_to_vmem [thread:$0]  %s30, 24576, %s32, [#allocation6], 192, 192, 12
    $region9: #{tpu_custom_call.1} parent=1 // pred_fallthru
      _
    // Predicated region
    $region10: #{tpu_custom_call.1} parent=1 // pred_check
      _
    $region11: #{tpu_custom_call.1} parent=1 // pred_check_branch
      %39 = sbr.rel (0) target = $region13
    $region12: #{tpu_custom_call.1} parent=1 // pred_region
      %41 = vsyncadd [#allocation6], 0
      %s42 = sshll.u32 %s2, 4
      %s43 = int_to_ptr.hbm [resolvable:$true] %s42
      %s44 = sshll.u32 [#allocation7], 4
      %s45 = int_to_ptr.vmem [resolvable:$true] %s44
      %50 = dma.hbm_to_vmem [thread:$0]  %s43, 9216, %s45, [#allocation6], 192, 192, 12
    $region13: #{tpu_custom_call.1} parent=1 // pred_fallthru
      _
    // Predicated region
    $region14: #{tpu_custom_call.1} parent=1 // pred_check
      _
    $region15: #{tpu_custom_call.1} parent=1 // pred_check_branch
      %52 = sbr.rel (0) target = $region17
    $region16: #{tpu_custom_call.1} parent=1 // pred_region
      %54 = vsyncadd [#allocation9], 0
      %s55 = sshll.u32 %s3, 4
      %s56 = int_to_ptr.hbm [resolvable:$true] %s55
      %s57 = sshll.u32 [#allocation8], 4
      %s58 = int_to_ptr.vmem [resolvable:$true] %s57
      %63 = dma.hbm_to_vmem [thread:$0]  %s56, 6144, %s58, [#allocation9], 128, 128, 8
    $region17: #{tpu_custom_call.1} parent=1 // pred_fallthru
      _
    // Predicated region
    $region18: #{tpu_custom_call.1} parent=1 // pred_check
      _
    $region19: #{tpu_custom_call.1} parent=1 // pred_check_branch
      %65 = sbr.rel (0) target = $region21
    $region20: #{tpu_custom_call.1} parent=1 // pred_region
      %67 = vsyncadd [#allocation9], 0
      %s69 = sshll.u32 %s4, 4
      %s70 = int_to_ptr.hbm [resolvable:$true] %s69
      %s71 = sshll.u32 [#allocation10], 4
      %s72 = int_to_ptr.vmem [resolvable:$true] %s71
      %74 = dma.hbm_to_vmem [thread:$0]  %s70, 384, %s72, [#allocation9]
    $region21: #{tpu_custom_call.1} parent=1 // pred_fallthru
      _
    // Predicated region
    $region22: #{tpu_custom_call.1} parent=1 // pred_check
      _
    $region23: #{tpu_custom_call.1} parent=1 // pred_check_branch
      %76 = sbr.rel (0) target = $region25
    $region24: #{tpu_custom_call.1} parent=1 // pred_region
      %78 = dma.done [#allocation3], 256
    $region25: #{tpu_custom_call.1} parent=1 // pred_fallthru
      _
    // Predicated region
    $region26: #{tpu_custom_call.1} parent=1 // pred_check
      _
    $region27: #{tpu_custom_call.1} parent=1 // pred_check_branch
      %80 = sbr.rel (0) target = $region29
    $region28: #{tpu_custom_call.1} parent=1 // pred_region
      %82 = dma.done [#allocation6], 24576
    $region29: #{tpu_custom_call.1} parent=1 // pred_fallthru
      _
    // Predicated region
    $region30: #{tpu_custom_call.1} parent=1 // pred_check
      _
    $region31: #{tpu_custom_call.1} parent=1 // pred_check_branch
      %84 = sbr.rel (0) target = $region33
    $region32: #{tpu_custom_call.1} parent=1 // pred_region
      %86 = dma.done [#allocation6], 9216
    $region33: #{tpu_custom_call.1} parent=1 // pred_fallthru
      _
    // Predicated region
    $region34: #{tpu_custom_call.1} parent=1 // pred_check
      _
    $region35: #{tpu_custom_call.1} parent=1 // pred_check_branch
      %88 = sbr.rel (0) target = $region37
    $region36: #{tpu_custom_call.1} parent=1 // pred_region
      %90 = dma.done [#allocation9], 6144
    $region37: #{tpu_custom_call.1} parent=1 // pred_fallthru
      _
    // Predicated region
    $region38: #{tpu_custom_call.1} parent=1 // pred_check
      _
    $region39: #{tpu_custom_call.1} parent=1 // pred_check_branch
      %92 = sbr.rel (0) target = $region41
    $region40: #{tpu_custom_call.1} parent=1 // pred_region
      %94 = dma.done [#allocation9], 384
    $region41: #{tpu_custom_call.1} parent=1 // pred_fallthru
      _
    %v95 = vld [vmem:[#allocation2] sm:$0xff]
    %v96 = vld [vmem:[#allocation2 + $0x8] sm:$0xff]
    %v97 = vld [vmem:[#allocation10] sm:$0x3f]
    %v98 = vld [vmem:[#allocation10 + $0x8] sm:$0x3f]
    %v99 = vld [vmem:[#allocation10 + $0x10] sm:$0x3f]
    %v100 = vld [vmem:[#allocation5] sm:$0xff]
    %v101 = vld [vmem:[#allocation5 + $0x8] sm:$0xf]
    %v102 = vld [vmem:[#allocation5 + $0xc] sm:$0xff]
    %v103 = vld [vmem:[#allocation5 + $0x14] sm:$0xf]
    %v104 = vld [vmem:[#allocation5 + $0x18] sm:$0xff]
    %v105 = vld [vmem:[#allocation5 + $0x20] sm:$0xf]
    %v106 = vld [vmem:[#allocation5 + $0x24] sm:$0xff]
    %v107 = vld [vmem:[#allocation5 + $0x2c] sm:$0xf]
    %v108 = vld [vmem:[#allocation5 + $0x30] sm:$0xff]
    %v109 = vld [vmem:[#allocation5 + $0x38] sm:$0xf]
    %v110 = vld [vmem:[#allocation5 + $0x3c] sm:$0xff]
    %v111 = vld [vmem:[#allocation5 + $0x44] sm:$0xf]
    %v112 = vld [vmem:[#allocation5 + $0x48] sm:$0xff]
    %v113 = vld [vmem:[#allocation5 + $0x50] sm:$0xf]
    %v114 = vld [vmem:[#allocation5 + $0x54] sm:$0xff]
    %v115 = vld [vmem:[#allocation5 + $0x5c] sm:$0xf]
    %v116 = vld [vmem:[#allocation5 + $0x60] sm:$0xff]
    %v117 = vld [vmem:[#allocation5 + $0x68] sm:$0xf]
    %v118 = vld [vmem:[#allocation5 + $0x6c] sm:$0xff]
    %v119 = vld [vmem:[#allocation5 + $0x74] sm:$0xf]
    %v120 = vld [vmem:[#allocation5 + $0x78] sm:$0xff]
    %v121 = vld [vmem:[#allocation5 + $0x80] sm:$0xf]
    %v122 = vld [vmem:[#allocation5 + $0x84] sm:$0xff]
    %v123 = vld [vmem:[#allocation5 + $0x8c] sm:$0xf]
    %v124 = vld [vmem:[#allocation5 + $0x90] sm:$0xff]
    %v125 = vld [vmem:[#allocation5 + $0x98] sm:$0xf]
    %v126 = vld [vmem:[#allocation5 + $0x9c] sm:$0xff]
    %v127 = vld [vmem:[#allocation5 + $0xa4] sm:$0xf]
    %v128 = vld [vmem:[#allocation5 + $0xa8] sm:$0xff]
    %v129 = vld [vmem:[#allocation5 + $0xb0] sm:$0xf]
    %v130 = vld [vmem:[#allocation5 + $0xb4] sm:$0xff]
    %v131 = vld [vmem:[#allocation5 + $0xbc] sm:$0xf]
    %v132 = vld [vmem:[#allocation5 + $0xc0] sm:$0xff]
    %v133 = vld [vmem:[#allocation5 + $0xc8] sm:$0xf]
    %v134 = vld [vmem:[#allocation5 + $0xcc] sm:$0xff]
    %v135 = vld [vmem:[#allocation5 + $0xd4] sm:$0xf]
    %v136 = vld [vmem:[#allocation5 + $0xd8] sm:$0xff]
    %v137 = vld [vmem:[#allocation5 + $0xe0] sm:$0xf]
    %v138 = vld [vmem:[#allocation5 + $0xe4] sm:$0xff]
    %v139 = vld [vmem:[#allocation5 + $0xec] sm:$0xf]
    %v140 = vld [vmem:[#allocation5 + $0xf0] sm:$0xff]
    %v141 = vld [vmem:[#allocation5 + $0xf8] sm:$0xf]
    %v142 = vld [vmem:[#allocation5 + $0xfc] sm:$0xff]
    %v143 = vld [vmem:[#allocation5 + $0x104] sm:$0xf]
    %v144 = vld [vmem:[#allocation5 + $0x108] sm:$0xff]
    %v145 = vld [vmem:[#allocation5 + $0x110] sm:$0xf]
    %v146 = vld [vmem:[#allocation5 + $0x114] sm:$0xff]
    %v147 = vld [vmem:[#allocation5 + $0x11c] sm:$0xf]
    %v148 = vld [vmem:[#allocation5 + $0x120] sm:$0xff]
    %v149 = vld [vmem:[#allocation5 + $0x128] sm:$0xf]
    %v150 = vld [vmem:[#allocation5 + $0x12c] sm:$0xff]
    %v151 = vld [vmem:[#allocation5 + $0x134] sm:$0xf]
    %v152 = vld [vmem:[#allocation5 + $0x138] sm:$0xff]
    %v153 = vld [vmem:[#allocation5 + $0x140] sm:$0xf]
    %v154 = vld [vmem:[#allocation5 + $0x144] sm:$0xff]
    %v155 = vld [vmem:[#allocation5 + $0x14c] sm:$0xf]
    %v156 = vld [vmem:[#allocation5 + $0x150] sm:$0xff]
    %v157 = vld [vmem:[#allocation5 + $0x158] sm:$0xf]
    %v158 = vld [vmem:[#allocation5 + $0x15c] sm:$0xff]
    %v159 = vld [vmem:[#allocation5 + $0x164] sm:$0xf]
    %v160 = vld [vmem:[#allocation5 + $0x168] sm:$0xff]
    %v161 = vld [vmem:[#allocation5 + $0x170] sm:$0xf]
    %v162 = vld [vmem:[#allocation5 + $0x174] sm:$0xff]
    %v163 = vld [vmem:[#allocation5 + $0x17c] sm:$0xf]
    %v164 = vld [vmem:[#allocation5 + $0x180] sm:$0xff]
    %v165 = vld [vmem:[#allocation5 + $0x188] sm:$0xf]
    %v166 = vld [vmem:[#allocation5 + $0x18c] sm:$0xff]
    %v167 = vld [vmem:[#allocation5 + $0x194] sm:$0xf]
    %v168 = vld [vmem:[#allocation5 + $0x198] sm:$0xff]
    %v169 = vld [vmem:[#allocation5 + $0x1a0] sm:$0xf]
    %v170 = vld [vmem:[#allocation5 + $0x1a4] sm:$0xff]
    %v171 = vld [vmem:[#allocation5 + $0x1ac] sm:$0xf]
    %v172 = vld [vmem:[#allocation5 + $0x1b0] sm:$0xff]
    %v173 = vld [vmem:[#allocation5 + $0x1b8] sm:$0xf]
    %v174 = vld [vmem:[#allocation5 + $0x1bc] sm:$0xff]
    %v175 = vld [vmem:[#allocation5 + $0x1c4] sm:$0xf]
    %v176 = vld [vmem:[#allocation5 + $0x1c8] sm:$0xff]
    %v177 = vld [vmem:[#allocation5 + $0x1d0] sm:$0xf]
    %v178 = vld [vmem:[#allocation5 + $0x1d4] sm:$0xff]
    %v179 = vld [vmem:[#allocation5 + $0x1dc] sm:$0xf]
    %v180 = vld [vmem:[#allocation5 + $0x1e0] sm:$0xff]
    %v181 = vld [vmem:[#allocation5 + $0x1e8] sm:$0xf]
    %v182 = vld [vmem:[#allocation5 + $0x1ec] sm:$0xff]
    %v183 = vld [vmem:[#allocation5 + $0x1f4] sm:$0xf]
    %v184 = vld [vmem:[#allocation5 + $0x1f8] sm:$0xff]
    %v185 = vld [vmem:[#allocation5 + $0x200] sm:$0xf]
    %v186 = vld [vmem:[#allocation5 + $0x204] sm:$0xff]
    %v187 = vld [vmem:[#allocation5 + $0x20c] sm:$0xf]
    %v188 = vld [vmem:[#allocation5 + $0x210] sm:$0xff]
    %v189 = vld [vmem:[#allocation5 + $0x218] sm:$0xf]
    %v190 = vld [vmem:[#allocation5 + $0x21c] sm:$0xff]
    %v191 = vld [vmem:[#allocation5 + $0x224] sm:$0xf]
    %v192 = vld [vmem:[#allocation5 + $0x228] sm:$0xff]
    %v193 = vld [vmem:[#allocation5 + $0x230] sm:$0xf]
    %v194 = vld [vmem:[#allocation5 + $0x234] sm:$0xff]
    %v195 = vld [vmem:[#allocation5 + $0x23c] sm:$0xf]
    %v196 = vld [vmem:[#allocation5 + $0x240] sm:$0xff]
    %v197 = vld [vmem:[#allocation5 + $0x248] sm:$0xf]
    %v198 = vld [vmem:[#allocation5 + $0x24c] sm:$0xff]
    %v199 = vld [vmem:[#allocation5 + $0x254] sm:$0xf]
    %v200 = vld [vmem:[#allocation5 + $0x258] sm:$0xff]
    %v201 = vld [vmem:[#allocation5 + $0x260] sm:$0xf]
    %v202 = vld [vmem:[#allocation5 + $0x264] sm:$0xff]
    %v203 = vld [vmem:[#allocation5 + $0x26c] sm:$0xf]
    %v204 = vld [vmem:[#allocation5 + $0x270] sm:$0xff]
    %v205 = vld [vmem:[#allocation5 + $0x278] sm:$0xf]
    %v206 = vld [vmem:[#allocation5 + $0x27c] sm:$0xff]
    %v207 = vld [vmem:[#allocation5 + $0x284] sm:$0xf]
    %v208 = vld [vmem:[#allocation5 + $0x288] sm:$0xff]
    %v209 = vld [vmem:[#allocation5 + $0x290] sm:$0xf]
    %v210 = vld [vmem:[#allocation5 + $0x294] sm:$0xff]
    %v211 = vld [vmem:[#allocation5 + $0x29c] sm:$0xf]
    %v212 = vld [vmem:[#allocation5 + $0x2a0] sm:$0xff]
    %v213 = vld [vmem:[#allocation5 + $0x2a8] sm:$0xf]
    %v214 = vld [vmem:[#allocation5 + $0x2ac] sm:$0xff]
    %v215 = vld [vmem:[#allocation5 + $0x2b4] sm:$0xf]
    %v216 = vld [vmem:[#allocation5 + $0x2b8] sm:$0xff]
    %v217 = vld [vmem:[#allocation5 + $0x2c0] sm:$0xf]
    %v218 = vld [vmem:[#allocation5 + $0x2c4] sm:$0xff]
    %v219 = vld [vmem:[#allocation5 + $0x2cc] sm:$0xf]
    %v220 = vld [vmem:[#allocation5 + $0x2d0] sm:$0xff]
    %v221 = vld [vmem:[#allocation5 + $0x2d8] sm:$0xf]
    %v222 = vld [vmem:[#allocation5 + $0x2dc] sm:$0xff]
    %v223 = vld [vmem:[#allocation5 + $0x2e4] sm:$0xf]
    %v224 = vld [vmem:[#allocation5 + $0x2e8] sm:$0xff]
    %v225 = vld [vmem:[#allocation5 + $0x2f0] sm:$0xf]
    %v226 = vld [vmem:[#allocation5 + $0x2f4] sm:$0xff]
    %v227 = vld [vmem:[#allocation5 + $0x2fc] sm:$0xf]
    %v228 = vld [vmem:[#allocation5 + $0x300] sm:$0xff]
    %v229 = vld [vmem:[#allocation5 + $0x308] sm:$0xf]
    %v230 = vld [vmem:[#allocation5 + $0x30c] sm:$0xff]
    %v231 = vld [vmem:[#allocation5 + $0x314] sm:$0xf]
    %v232 = vld [vmem:[#allocation5 + $0x318] sm:$0xff]
    %v233 = vld [vmem:[#allocation5 + $0x320] sm:$0xf]
    %v234 = vld [vmem:[#allocation5 + $0x324] sm:$0xff]
    %v235 = vld [vmem:[#allocation5 + $0x32c] sm:$0xf]
    %v236 = vld [vmem:[#allocation5 + $0x330] sm:$0xff]
    %v237 = vld [vmem:[#allocation5 + $0x338] sm:$0xf]
    %v238 = vld [vmem:[#allocation5 + $0x33c] sm:$0xff]
    %v239 = vld [vmem:[#allocation5 + $0x344] sm:$0xf]
    %v240 = vld [vmem:[#allocation5 + $0x348] sm:$0xff]
    %v241 = vld [vmem:[#allocation5 + $0x350] sm:$0xf]
    %v242 = vld [vmem:[#allocation5 + $0x354] sm:$0xff]
    %v243 = vld [vmem:[#allocation5 + $0x35c] sm:$0xf]
    %v244 = vld [vmem:[#allocation5 + $0x360] sm:$0xff]
    %v245 = vld [vmem:[#allocation5 + $0x368] sm:$0xf]
    %v246 = vld [vmem:[#allocation5 + $0x36c] sm:$0xff]
    %v247 = vld [vmem:[#allocation5 + $0x374] sm:$0xf]
    %v248 = vld [vmem:[#allocation5 + $0x378] sm:$0xff]
    %v249 = vld [vmem:[#allocation5 + $0x380] sm:$0xf]
    %v250 = vld [vmem:[#allocation5 + $0x384] sm:$0xff]
    %v251 = vld [vmem:[#allocation5 + $0x38c] sm:$0xf]
    %v252 = vld [vmem:[#allocation5 + $0x390] sm:$0xff]
    %v253 = vld [vmem:[#allocation5 + $0x398] sm:$0xf]
    %v254 = vld [vmem:[#allocation5 + $0x39c] sm:$0xff]
    %v255 = vld [vmem:[#allocation5 + $0x3a4] sm:$0xf]
    %v256 = vld [vmem:[#allocation5 + $0x3a8] sm:$0xff]
    %v257 = vld [vmem:[#allocation5 + $0x3b0] sm:$0xf]
    %v258 = vld [vmem:[#allocation5 + $0x3b4] sm:$0xff]
    %v259 = vld [vmem:[#allocation5 + $0x3bc] sm:$0xf]
    %v260 = vld [vmem:[#allocation5 + $0x3c0] sm:$0xff]
    %v261 = vld [vmem:[#allocation5 + $0x3c8] sm:$0xf]
    %v262 = vld [vmem:[#allocation5 + $0x3cc] sm:$0xff]
    %v263 = vld [vmem:[#allocation5 + $0x3d4] sm:$0xf]
    %v264 = vld [vmem:[#allocation5 + $0x3d8] sm:$0xff]
    %v265 = vld [vmem:[#allocation5 + $0x3e0] sm:$0xf]
    %v266 = vld [vmem:[#allocation5 + $0x3e4] sm:$0xff]
    %v267 = vld [vmem:[#allocation5 + $0x3ec] sm:$0xf]
    %v268 = vld [vmem:[#allocation5 + $0x3f0] sm:$0xff]
    %v269 = vld [vmem:[#allocation5 + $0x3f8] sm:$0xf]
    %v270 = vld [vmem:[#allocation5 + $0x3fc] sm:$0xff]
    %v271 = vld [vmem:[#allocation5 + $0x404] sm:$0xf]
    %v272 = vld [vmem:[#allocation5 + $0x408] sm:$0xff]
    %v273 = vld [vmem:[#allocation5 + $0x410] sm:$0xf]
    %v274 = vld [vmem:[#allocation5 + $0x414] sm:$0xff]
    %v275 = vld [vmem:[#allocation5 + $0x41c] sm:$0xf]
    %v276 = vld [vmem:[#allocation5 + $0x420] sm:$0xff]
    %v277 = vld [vmem:[#allocation5 + $0x428] sm:$0xf]
    %v278 = vld [vmem:[#allocation5 + $0x42c] sm:$0xff]
    %v279 = vld [vmem:[#allocation5 + $0x434] sm:$0xf]
    %v280 = vld [vmem:[#allocation5 + $0x438] sm:$0xff]
    %v281 = vld [vmem:[#allocation5 + $0x440] sm:$0xf]
    %v282 = vld [vmem:[#allocation5 + $0x444] sm:$0xff]
    %v283 = vld [vmem:[#allocation5 + $0x44c] sm:$0xf]
    %v284 = vld [vmem:[#allocation5 + $0x450] sm:$0xff]
    %v285 = vld [vmem:[#allocation5 + $0x458] sm:$0xf]
    %v286 = vld [vmem:[#allocation5 + $0x45c] sm:$0xff]
    %v287 = vld [vmem:[#allocation5 + $0x464] sm:$0xf]
    %v288 = vld [vmem:[#allocation5 + $0x468] sm:$0xff]
    %v289 = vld [vmem:[#allocation5 + $0x470] sm:$0xf]
    %v290 = vld [vmem:[#allocation5 + $0x474] sm:$0xff]
    %v291 = vld [vmem:[#allocation5 + $0x47c] sm:$0xf]
    %v292 = vld [vmem:[#allocation5 + $0x480] sm:$0xff]
    %v293 = vld [vmem:[#allocation5 + $0x488] sm:$0xf]
    %v294 = vld [vmem:[#allocation5 + $0x48c] sm:$0xff]
    %v295 = vld [vmem:[#allocation5 + $0x494] sm:$0xf]
    %v296 = vld [vmem:[#allocation5 + $0x498] sm:$0xff]
    %v297 = vld [vmem:[#allocation5 + $0x4a0] sm:$0xf]
    %v298 = vld [vmem:[#allocation5 + $0x4a4] sm:$0xff]
    %v299 = vld [vmem:[#allocation5 + $0x4ac] sm:$0xf]
    %v300 = vld [vmem:[#allocation5 + $0x4b0] sm:$0xff]
    %v301 = vld [vmem:[#allocation5 + $0x4b8] sm:$0xf]
    %v302 = vld [vmem:[#allocation5 + $0x4bc] sm:$0xff]
    %v303 = vld [vmem:[#allocation5 + $0x4c4] sm:$0xf]
    %v304 = vld [vmem:[#allocation5 + $0x4c8] sm:$0xff]
    %v305 = vld [vmem:[#allocation5 + $0x4d0] sm:$0xf]
    %v306 = vld [vmem:[#allocation5 + $0x4d4] sm:$0xff]
    %v307 = vld [vmem:[#allocation5 + $0x4dc] sm:$0xf]
    %v308 = vld [vmem:[#allocation5 + $0x4e0] sm:$0xff]
    %v309 = vld [vmem:[#allocation5 + $0x4e8] sm:$0xf]
    %v310 = vld [vmem:[#allocation5 + $0x4ec] sm:$0xff]
    %v311 = vld [vmem:[#allocation5 + $0x4f4] sm:$0xf]
    %v312 = vld [vmem:[#allocation5 + $0x4f8] sm:$0xff]
    %v313 = vld [vmem:[#allocation5 + $0x500] sm:$0xf]
    %v314 = vld [vmem:[#allocation5 + $0x504] sm:$0xff]
    %v315 = vld [vmem:[#allocation5 + $0x50c] sm:$0xf]
    %v316 = vld [vmem:[#allocation5 + $0x510] sm:$0xff]
    %v317 = vld [vmem:[#allocation5 + $0x518] sm:$0xf]
    %v318 = vld [vmem:[#allocation5 + $0x51c] sm:$0xff]
    %v319 = vld [vmem:[#allocation5 + $0x524] sm:$0xf]
    %v320 = vld [vmem:[#allocation5 + $0x528] sm:$0xff]
    %v321 = vld [vmem:[#allocation5 + $0x530] sm:$0xf]
    %v322 = vld [vmem:[#allocation5 + $0x534] sm:$0xff]
    %v323 = vld [vmem:[#allocation5 + $0x53c] sm:$0xf]
    %v324 = vld [vmem:[#allocation5 + $0x540] sm:$0xff]
    %v325 = vld [vmem:[#allocation5 + $0x548] sm:$0xf]
    %v326 = vld [vmem:[#allocation5 + $0x54c] sm:$0xff]
    %v327 = vld [vmem:[#allocation5 + $0x554] sm:$0xf]
    %v328 = vld [vmem:[#allocation5 + $0x558] sm:$0xff]
    %v329 = vld [vmem:[#allocation5 + $0x560] sm:$0xf]
    %v330 = vld [vmem:[#allocation5 + $0x564] sm:$0xff]
    %v331 = vld [vmem:[#allocation5 + $0x56c] sm:$0xf]
    %v332 = vld [vmem:[#allocation5 + $0x570] sm:$0xff]
    %v333 = vld [vmem:[#allocation5 + $0x578] sm:$0xf]
    %v334 = vld [vmem:[#allocation5 + $0x57c] sm:$0xff]
    %v335 = vld [vmem:[#allocation5 + $0x584] sm:$0xf]
    %v336 = vld [vmem:[#allocation5 + $0x588] sm:$0xff]
    %v337 = vld [vmem:[#allocation5 + $0x590] sm:$0xf]
    %v338 = vld [vmem:[#allocation5 + $0x594] sm:$0xff]
    %v339 = vld [vmem:[#allocation5 + $0x59c] sm:$0xf]
    %v340 = vld [vmem:[#allocation5 + $0x5a0] sm:$0xff]
    %v341 = vld [vmem:[#allocation5 + $0x5a8] sm:$0xf]
    %v342 = vld [vmem:[#allocation5 + $0x5ac] sm:$0xff]
    %v343 = vld [vmem:[#allocation5 + $0x5b4] sm:$0xf]
    %v344 = vld [vmem:[#allocation5 + $0x5b8] sm:$0xff]
    %v345 = vld [vmem:[#allocation5 + $0x5c0] sm:$0xf]
    %v346 = vld [vmem:[#allocation5 + $0x5c4] sm:$0xff]
    %v347 = vld [vmem:[#allocation5 + $0x5cc] sm:$0xf]
    %v348 = vld [vmem:[#allocation5 + $0x5d0] sm:$0xff]
    %v349 = vld [vmem:[#allocation5 + $0x5d8] sm:$0xf]
    %v350 = vld [vmem:[#allocation5 + $0x5dc] sm:$0xff]
    %v351 = vld [vmem:[#allocation5 + $0x5e4] sm:$0xf]
    %v352 = vld [vmem:[#allocation5 + $0x5e8] sm:$0xff]
    %v353 = vld [vmem:[#allocation5 + $0x5f0] sm:$0xf]
    %v354 = vld [vmem:[#allocation5 + $0x5f4] sm:$0xff]
    %v355 = vld [vmem:[#allocation5 + $0x5fc] sm:$0xf]
    %v356 = vunpack.c.l.bf16 %v100
    %v357 = vunpack.c.h.bf16 %v100
    %v358 = vunpack.c.l.bf16 %v101
    %v359 = vunpack.c.l.bf16 %v102
    %v360 = vunpack.c.h.bf16 %v102
    %v361 = vunpack.c.l.bf16 %v103
    %v362 = vunpack.c.l.bf16 %v104
    %v363 = vunpack.c.h.bf16 %v104
    %v364 = vunpack.c.l.bf16 %v105
    %v365 = vunpack.c.l.bf16 %v106
    %v366 = vunpack.c.h.bf16 %v106
    %v367 = vunpack.c.l.bf16 %v107
    %v368 = vunpack.c.l.bf16 %v108
    %v369 = vunpack.c.h.bf16 %v108
    %v370 = vunpack.c.l.bf16 %v109
    %v371 = vunpack.c.l.bf16 %v110
    %v372 = vunpack.c.h.bf16 %v110
    %v373 = vunpack.c.l.bf16 %v111
    %v374 = vunpack.c.l.bf16 %v112
    %v375 = vunpack.c.h.bf16 %v112
    %v376 = vunpack.c.l.bf16 %v113
    %v377 = vunpack.c.l.bf16 %v114
    %v378 = vunpack.c.h.bf16 %v114
    %v379 = vunpack.c.l.bf16 %v115
    %v380 = vunpack.c.l.bf16 %v116
    %v381 = vunpack.c.h.bf16 %v116
    %v382 = vunpack.c.l.bf16 %v117
    %v383 = vunpack.c.l.bf16 %v118
    %v384 = vunpack.c.h.bf16 %v118
    %v385 = vunpack.c.l.bf16 %v119
    %v386 = vunpack.c.l.bf16 %v120
    %v387 = vunpack.c.h.bf16 %v120
    %v388 = vunpack.c.l.bf16 %v121
    %v389 = vunpack.c.l.bf16 %v122
    %v390 = vunpack.c.h.bf16 %v122
    %v391 = vunpack.c.l.bf16 %v123
    %v392 = vunpack.c.l.bf16 %v124
    %v393 = vunpack.c.h.bf16 %v124
    %v394 = vunpack.c.l.bf16 %v125
    %v395 = vunpack.c.l.bf16 %v126
    %v396 = vunpack.c.h.bf16 %v126
    %v397 = vunpack.c.l.bf16 %v127
    %v398 = vunpack.c.l.bf16 %v128
    %v399 = vunpack.c.h.bf16 %v128
    %v400 = vunpack.c.l.bf16 %v129
    %v401 = vunpack.c.l.bf16 %v130
    %v402 = vunpack.c.h.bf16 %v130
    %v403 = vunpack.c.l.bf16 %v131
    %v404 = vunpack.c.l.bf16 %v132
    %v405 = vunpack.c.h.bf16 %v132
    %v406 = vunpack.c.l.bf16 %v133
    %v407 = vunpack.c.l.bf16 %v134
    %v408 = vunpack.c.h.bf16 %v134
    %v409 = vunpack.c.l.bf16 %v135
    %v410 = vunpack.c.l.bf16 %v136
    %v411 = vunpack.c.h.bf16 %v136
    %v412 = vunpack.c.l.bf16 %v137
    %v413 = vunpack.c.l.bf16 %v138
    %v414 = vunpack.c.h.bf16 %v138
    %v415 = vunpack.c.l.bf16 %v139
    %v416 = vunpack.c.l.bf16 %v140
    %v417 = vunpack.c.h.bf16 %v140
    %v418 = vunpack.c.l.bf16 %v141
    %v419 = vunpack.c.l.bf16 %v142
    %v420 = vunpack.c.h.bf16 %v142
    %v421 = vunpack.c.l.bf16 %v143
    %v422 = vunpack.c.l.bf16 %v144
    %v423 = vunpack.c.h.bf16 %v144
    %v424 = vunpack.c.l.bf16 %v145
    %v425 = vunpack.c.l.bf16 %v146
    %v426 = vunpack.c.h.bf16 %v146
    %v427 = vunpack.c.l.bf16 %v147
    %v428 = vunpack.c.l.bf16 %v148
    %v429 = vunpack.c.h.bf16 %v148
    %v430 = vunpack.c.l.bf16 %v149
    %v431 = vunpack.c.l.bf16 %v150
    %v432 = vunpack.c.h.bf16 %v150
    %v433 = vunpack.c.l.bf16 %v151
    %v434 = vunpack.c.l.bf16 %v152
    %v435 = vunpack.c.h.bf16 %v152
    %v436 = vunpack.c.l.bf16 %v153
    %v437 = vunpack.c.l.bf16 %v154
    %v438 = vunpack.c.h.bf16 %v154
    %v439 = vunpack.c.l.bf16 %v155
    %v440 = vunpack.c.l.bf16 %v156
    %v441 = vunpack.c.h.bf16 %v156
    %v442 = vunpack.c.l.bf16 %v157
    %v443 = vunpack.c.l.bf16 %v158
    %v444 = vunpack.c.h.bf16 %v158
    %v445 = vunpack.c.l.bf16 %v159
    %v446 = vunpack.c.l.bf16 %v160
    %v447 = vunpack.c.h.bf16 %v160
    %v448 = vunpack.c.l.bf16 %v161
    %v449 = vunpack.c.l.bf16 %v162
    %v450 = vunpack.c.h.bf16 %v162
    %v451 = vunpack.c.l.bf16 %v163
    %v452 = vunpack.c.l.bf16 %v164
    %v453 = vunpack.c.h.bf16 %v164
    %v454 = vunpack.c.l.bf16 %v165
    %v455 = vunpack.c.l.bf16 %v166
    %v456 = vunpack.c.h.bf16 %v166
    %v457 = vunpack.c.l.bf16 %v167
    %v458 = vunpack.c.l.bf16 %v168
    %v459 = vunpack.c.h.bf16 %v168
    %v460 = vunpack.c.l.bf16 %v169
    %v461 = vunpack.c.l.bf16 %v170
    %v462 = vunpack.c.h.bf16 %v170
    %v463 = vunpack.c.l.bf16 %v171
    %v464 = vunpack.c.l.bf16 %v172
    %v465 = vunpack.c.h.bf16 %v172
    %v466 = vunpack.c.l.bf16 %v173
    %v467 = vunpack.c.l.bf16 %v174
    %v468 = vunpack.c.h.bf16 %v174
    %v469 = vunpack.c.l.bf16 %v175
    %v470 = vunpack.c.l.bf16 %v176
    %v471 = vunpack.c.h.bf16 %v176
    %v472 = vunpack.c.l.bf16 %v177
    %v473 = vunpack.c.l.bf16 %v178
    %v474 = vunpack.c.h.bf16 %v178
    %v475 = vunpack.c.l.bf16 %v179
    %v476 = vunpack.c.l.bf16 %v180
    %v477 = vunpack.c.h.bf16 %v180
    %v478 = vunpack.c.l.bf16 %v181
    %v479 = vunpack.c.l.bf16 %v182
    %v480 = vunpack.c.h.bf16 %v182
    %v481 = vunpack.c.l.bf16 %v183
    %v482 = vunpack.c.l.bf16 %v184
    %v483 = vunpack.c.h.bf16 %v184
    %v484 = vunpack.c.l.bf16 %v185
    %v485 = vunpack.c.l.bf16 %v186
    %v486 = vunpack.c.h.bf16 %v186
    %v487 = vunpack.c.l.bf16 %v187
    %v488 = vunpack.c.l.bf16 %v188
    %v489 = vunpack.c.h.bf16 %v188
    %v490 = vunpack.c.l.bf16 %v189
    %v491 = vunpack.c.l.bf16 %v190
    %v492 = vunpack.c.h.bf16 %v190
    %v493 = vunpack.c.l.bf16 %v191
    %v494 = vunpack.c.l.bf16 %v192
    %v495 = vunpack.c.h.bf16 %v192
    %v496 = vunpack.c.l.bf16 %v193
    %v497 = vunpack.c.l.bf16 %v194
    %v498 = vunpack.c.h.bf16 %v194
    %v499 = vunpack.c.l.bf16 %v195
    %v500 = vunpack.c.l.bf16 %v196
    %v501 = vunpack.c.h.bf16 %v196
    %v502 = vunpack.c.l.bf16 %v197
    %v503 = vunpack.c.l.bf16 %v198
    %v504 = vunpack.c.h.bf16 %v198
    %v505 = vunpack.c.l.bf16 %v199
    %v506 = vunpack.c.l.bf16 %v200
    %v507 = vunpack.c.h.bf16 %v200
    %v508 = vunpack.c.l.bf16 %v201
    %v509 = vunpack.c.l.bf16 %v202
    %v510 = vunpack.c.h.bf16 %v202
    %v511 = vunpack.c.l.bf16 %v203
    %v512 = vunpack.c.l.bf16 %v204
    %v513 = vunpack.c.h.bf16 %v204
    %v514 = vunpack.c.l.bf16 %v205
    %v515 = vunpack.c.l.bf16 %v206
    %v516 = vunpack.c.h.bf16 %v206
    %v517 = vunpack.c.l.bf16 %v207
    %v518 = vunpack.c.l.bf16 %v208
    %v519 = vunpack.c.h.bf16 %v208
    %v520 = vunpack.c.l.bf16 %v209
    %v521 = vunpack.c.l.bf16 %v210
    %v522 = vunpack.c.h.bf16 %v210
    %v523 = vunpack.c.l.bf16 %v211
    %v524 = vunpack.c.l.bf16 %v212
    %v525 = vunpack.c.h.bf16 %v212
    %v526 = vunpack.c.l.bf16 %v213
    %v527 = vunpack.c.l.bf16 %v214
    %v528 = vunpack.c.h.bf16 %v214
    %v529 = vunpack.c.l.bf16 %v215
    %v530 = vunpack.c.l.bf16 %v216
    %v531 = vunpack.c.h.bf16 %v216
    %v532 = vunpack.c.l.bf16 %v217
    %v533 = vunpack.c.l.bf16 %v218
    %v534 = vunpack.c.h.bf16 %v218
    %v535 = vunpack.c.l.bf16 %v219
    %v536 = vunpack.c.l.bf16 %v220
    %v537 = vunpack.c.h.bf16 %v220
    %v538 = vunpack.c.l.bf16 %v221
    %v539 = vunpack.c.l.bf16 %v222
    %v540 = vunpack.c.h.bf16 %v222
    %v541 = vunpack.c.l.bf16 %v223
    %v542 = vunpack.c.l.bf16 %v224
    %v543 = vunpack.c.h.bf16 %v224
    %v544 = vunpack.c.l.bf16 %v225
    %v545 = vunpack.c.l.bf16 %v226
    %v546 = vunpack.c.h.bf16 %v226
    %v547 = vunpack.c.l.bf16 %v227
    %v548 = vunpack.c.l.bf16 %v228
    %v549 = vunpack.c.h.bf16 %v228
    %v550 = vunpack.c.l.bf16 %v229
    %v551 = vunpack.c.l.bf16 %v230
    %v552 = vunpack.c.h.bf16 %v230
    %v553 = vunpack.c.l.bf16 %v231
    %v554 = vunpack.c.l.bf16 %v232
    %v555 = vunpack.c.h.bf16 %v232
    %v556 = vunpack.c.l.bf16 %v233
    %v557 = vunpack.c.l.bf16 %v234
    %v558 = vunpack.c.h.bf16 %v234
    %v559 = vunpack.c.l.bf16 %v235
    %v560 = vunpack.c.l.bf16 %v236
    %v561 = vunpack.c.h.bf16 %v236
    %v562 = vunpack.c.l.bf16 %v237
    %v563 = vunpack.c.l.bf16 %v238
    %v564 = vunpack.c.h.bf16 %v238
    %v565 = vunpack.c.l.bf16 %v239
    %v566 = vunpack.c.l.bf16 %v240
    %v567 = vunpack.c.h.bf16 %v240
    %v568 = vunpack.c.l.bf16 %v241
    %v569 = vunpack.c.l.bf16 %v242
    %v570 = vunpack.c.h.bf16 %v242
    %v571 = vunpack.c.l.bf16 %v243
    %v572 = vunpack.c.l.bf16 %v244
    %v573 = vunpack.c.h.bf16 %v244
    %v574 = vunpack.c.l.bf16 %v245
    %v575 = vunpack.c.l.bf16 %v246
    %v576 = vunpack.c.h.bf16 %v246
    %v577 = vunpack.c.l.bf16 %v247
    %v578 = vunpack.c.l.bf16 %v248
    %v579 = vunpack.c.h.bf16 %v248
    %v580 = vunpack.c.l.bf16 %v249
    %v581 = vunpack.c.l.bf16 %v250
    %v582 = vunpack.c.h.bf16 %v250
    %v583 = vunpack.c.l.bf16 %v251
    %v584 = vunpack.c.l.bf16 %v252
    %v585 = vunpack.c.h.bf16 %v252
    %v586 = vunpack.c.l.bf16 %v253
    %v587 = vunpack.c.l.bf16 %v254
    %v588 = vunpack.c.h.bf16 %v254
    %v589 = vunpack.c.l.bf16 %v255
    %v590 = vunpack.c.l.bf16 %v256
    %v591 = vunpack.c.h.bf16 %v256
    %v592 = vunpack.c.l.bf16 %v257
    %v593 = vunpack.c.l.bf16 %v258
    %v594 = vunpack.c.h.bf16 %v258
    %v595 = vunpack.c.l.bf16 %v259
    %v596 = vunpack.c.l.bf16 %v260
    %v597 = vunpack.c.h.bf16 %v260
    %v598 = vunpack.c.l.bf16 %v261
    %v599 = vunpack.c.l.bf16 %v262
    %v600 = vunpack.c.h.bf16 %v262
    %v601 = vunpack.c.l.bf16 %v263
    %v602 = vunpack.c.l.bf16 %v264
    %v603 = vunpack.c.h.bf16 %v264
    %v604 = vunpack.c.l.bf16 %v265
    %v605 = vunpack.c.l.bf16 %v266
    %v606 = vunpack.c.h.bf16 %v266
    %v607 = vunpack.c.l.bf16 %v267
    %v608 = vunpack.c.l.bf16 %v268
    %v609 = vunpack.c.h.bf16 %v268
    %v610 = vunpack.c.l.bf16 %v269
    %v611 = vunpack.c.l.bf16 %v270
    %v612 = vunpack.c.h.bf16 %v270
    %v613 = vunpack.c.l.bf16 %v271
    %v614 = vunpack.c.l.bf16 %v272
    %v615 = vunpack.c.h.bf16 %v272
    %v616 = vunpack.c.l.bf16 %v273
    %v617 = vunpack.c.l.bf16 %v274
    %v618 = vunpack.c.h.bf16 %v274
    %v619 = vunpack.c.l.bf16 %v275
    %v620 = vunpack.c.l.bf16 %v276
    %v621 = vunpack.c.h.bf16 %v276
    %v622 = vunpack.c.l.bf16 %v277
    %v623 = vunpack.c.l.bf16 %v278
    %v624 = vunpack.c.h.bf16 %v278
    %v625 = vunpack.c.l.bf16 %v279
    %v626 = vunpack.c.l.bf16 %v280
    %v627 = vunpack.c.h.bf16 %v280
    %v628 = vunpack.c.l.bf16 %v281
    %v629 = vunpack.c.l.bf16 %v282
    %v630 = vunpack.c.h.bf16 %v282
    %v631 = vunpack.c.l.bf16 %v283
    %v632 = vunpack.c.l.bf16 %v284
    %v633 = vunpack.c.h.bf16 %v284
    %v634 = vunpack.c.l.bf16 %v285
    %v635 = vunpack.c.l.bf16 %v286
    %v636 = vunpack.c.h.bf16 %v286
    %v637 = vunpack.c.l.bf16 %v287
    %v638 = vunpack.c.l.bf16 %v288
    %v639 = vunpack.c.h.bf16 %v288
    %v640 = vunpack.c.l.bf16 %v289
    %v641 = vunpack.c.l.bf16 %v290
    %v642 = vunpack.c.h.bf16 %v290
    %v643 = vunpack.c.l.bf16 %v291
    %v644 = vunpack.c.l.bf16 %v292
    %v645 = vunpack.c.h.bf16 %v292
    %v646 = vunpack.c.l.bf16 %v293
    %v647 = vunpack.c.l.bf16 %v294
    %v648 = vunpack.c.h.bf16 %v294
    %v649 = vunpack.c.l.bf16 %v295
    %v650 = vunpack.c.l.bf16 %v296
    %v651 = vunpack.c.h.bf16 %v296
    %v652 = vunpack.c.l.bf16 %v297
    %v653 = vunpack.c.l.bf16 %v298
    %v654 = vunpack.c.h.bf16 %v298
    %v655 = vunpack.c.l.bf16 %v299
    %v656 = vunpack.c.l.bf16 %v300
    %v657 = vunpack.c.h.bf16 %v300
    %v658 = vunpack.c.l.bf16 %v301
    %v659 = vunpack.c.l.bf16 %v302
    %v660 = vunpack.c.h.bf16 %v302
    %v661 = vunpack.c.l.bf16 %v303
    %v662 = vunpack.c.l.bf16 %v304
    %v663 = vunpack.c.h.bf16 %v304
    %v664 = vunpack.c.l.bf16 %v305
    %v665 = vunpack.c.l.bf16 %v306
    %v666 = vunpack.c.h.bf16 %v306
    %v667 = vunpack.c.l.bf16 %v307
    %v668 = vunpack.c.l.bf16 %v308
    %v669 = vunpack.c.h.bf16 %v308
    %v670 = vunpack.c.l.bf16 %v309
    %v671 = vunpack.c.l.bf16 %v310
    %v672 = vunpack.c.h.bf16 %v310
    %v673 = vunpack.c.l.bf16 %v311
    %v674 = vunpack.c.l.bf16 %v312
    %v675 = vunpack.c.h.bf16 %v312
    %v676 = vunpack.c.l.bf16 %v313
    %v677 = vunpack.c.l.bf16 %v314
    %v678 = vunpack.c.h.bf16 %v314
    %v679 = vunpack.c.l.bf16 %v315
    %v680 = vunpack.c.l.bf16 %v316
    %v681 = vunpack.c.h.bf16 %v316
    %v682 = vunpack.c.l.bf16 %v317
    %v683 = vunpack.c.l.bf16 %v318
    %v684 = vunpack.c.h.bf16 %v318
    %v685 = vunpack.c.l.bf16 %v319
    %v686 = vunpack.c.l.bf16 %v320
    %v687 = vunpack.c.h.bf16 %v320
    %v688 = vunpack.c.l.bf16 %v321
    %v689 = vunpack.c.l.bf16 %v322
    %v690 = vunpack.c.h.bf16 %v322
    %v691 = vunpack.c.l.bf16 %v323
    %v692 = vunpack.c.l.bf16 %v324
    %v693 = vunpack.c.h.bf16 %v324
    %v694 = vunpack.c.l.bf16 %v325
    %v695 = vunpack.c.l.bf16 %v326
    %v696 = vunpack.c.h.bf16 %v326
    %v697 = vunpack.c.l.bf16 %v327
    %v698 = vunpack.c.l.bf16 %v328
    %v699 = vunpack.c.h.bf16 %v328
    %v700 = vunpack.c.l.bf16 %v329
    %v701 = vunpack.c.l.bf16 %v330
    %v702 = vunpack.c.h.bf16 %v330
    %v703 = vunpack.c.l.bf16 %v331
    %v704 = vunpack.c.l.bf16 %v332
    %v705 = vunpack.c.h.bf16 %v332
    %v706 = vunpack.c.l.bf16 %v333
    %v707 = vunpack.c.l.bf16 %v334
    %v708 = vunpack.c.h.bf16 %v334
    %v709 = vunpack.c.l.bf16 %v335
    %v710 = vunpack.c.l.bf16 %v336
    %v711 = vunpack.c.h.bf16 %v336
    %v712 = vunpack.c.l.bf16 %v337
    %v713 = vunpack.c.l.bf16 %v338
    %v714 = vunpack.c.h.bf16 %v338
    %v715 = vunpack.c.l.bf16 %v339
    %v716 = vunpack.c.l.bf16 %v340
    %v717 = vunpack.c.h.bf16 %v340
    %v718 = vunpack.c.l.bf16 %v341
    %v719 = vunpack.c.l.bf16 %v342
    %v720 = vunpack.c.h.bf16 %v342
    %v721 = vunpack.c.l.bf16 %v343
    %v722 = vunpack.c.l.bf16 %v344
    %v723 = vunpack.c.h.bf16 %v344
    %v724 = vunpack.c.l.bf16 %v345
    %v725 = vunpack.c.l.bf16 %v346
    %v726 = vunpack.c.h.bf16 %v346
    %v727 = vunpack.c.l.bf16 %v347
    %v728 = vunpack.c.l.bf16 %v348
    %v729 = vunpack.c.h.bf16 %v348
    %v730 = vunpack.c.l.bf16 %v349
    %v731 = vunpack.c.l.bf16 %v350
    %v732 = vunpack.c.h.bf16 %v350
    %v733 = vunpack.c.l.bf16 %v351
    %v734 = vunpack.c.l.bf16 %v352
    %v735 = vunpack.c.h.bf16 %v352
    %v736 = vunpack.c.l.bf16 %v353
    %v737 = vunpack.c.l.bf16 %v354
    %v738 = vunpack.c.h.bf16 %v354
    %v739 = vunpack.c.l.bf16 %v355
    %742 = vst [vmem:[#allocation1] ss:$4 sm:$0xff] %v95
    %s743 = scalar_lea.vmem [#allocation1], 32
    %744 = vst [vmem:[%s743] ss:$4 sm:$0xff] %v96
    %v745 = vld.sshfl [vmem:[#allocation1] sm:$0xff pattern:$0x73625140]
    %v746 = vld.sshfl [vmem:[#allocation1 + $0x8] sm:$0xff pattern:$0x73625140]
    %v747 = vld.sshfl [vmem:[#allocation1 + $0x10] sm:$0xff pattern:$0x73625140]
    %v748 = vld.sshfl [vmem:[#allocation1 + $0x18] sm:$0xff pattern:$0x73625140]
    %v749 = vld.sshfl [vmem:[#allocation1 + $0x20] sm:$0xff pattern:$0x73625140]
    %v750 = vld.sshfl [vmem:[#allocation1 + $0x28] sm:$0xff pattern:$0x73625140]
    %v751 = vld.sshfl [vmem:[#allocation1 + $0x30] sm:$0xff pattern:$0x73625140]
    %v752 = vld.sshfl [vmem:[#allocation1 + $0x38] sm:$0xff pattern:$0x73625140]
    %761 = vmatpush.msra.mxu0 %v401
    %762 = vmatpush.msra.mxu0 %v398
    %763 = vmatpush.msra.mxu0 %v395
    %764 = vmatpush.msra.mxu0 %v392
    %765 = vmatpush.msra.mxu0 %v389
    %766 = vmatpush.msra.mxu0 %v386
    %767 = vmatpush.msra.mxu0 %v383
    %768 = vmatpush.msra.mxu0 %v380
    %769 = vmatpush.msra.mxu0 %v377
    %770 = vmatpush.msra.mxu0 %v374
    %771 = vmatpush.msra.mxu0 %v371
    %772 = vmatpush.msra.mxu0 %v368
    %773 = vmatpush.msra.mxu0 %v365
    %774 = vmatpush.msra.mxu0 %v362
    %775 = vmatpush.msra.mxu0 %v359
    %776 = vmatpush.msra.mxu0 %v356
    %777 = vmatmul.f32.gmra.mxu0 %v745
    %v778 = vpop.f32.mrf.mxu0
    %v779 = vadd.f32 0.0, %v778
    %780 = vdwg.mxu0
    %781 = vmatpush.msra.mxu0 %v449
    %782 = vmatpush.msra.mxu0 %v446
    %783 = vmatpush.msra.mxu0 %v443
    %784 = vmatpush.msra.mxu0 %v440
    %785 = vmatpush.msra.mxu0 %v437
    %786 = vmatpush.msra.mxu0 %v434
    %787 = vmatpush.msra.mxu0 %v431
    %788 = vmatpush.msra.mxu0 %v428
    %789 = vmatpush.msra.mxu0 %v425
    %790 = vmatpush.msra.mxu0 %v422
    %791 = vmatpush.msra.mxu0 %v419
    %792 = vmatpush.msra.mxu0 %v416
    %793 = vmatpush.msra.mxu0 %v413
    %794 = vmatpush.msra.mxu0 %v410
    %795 = vmatpush.msra.mxu0 %v407
    %796 = vmatpush.msra.mxu0 %v404
    %797 = vmatmul.f32.gmra.mxu0 %v746
    %v798 = vpop.f32.mrf.mxu0
    %v799 = vadd.f32 %v779, %v798
    %800 = vdwg.mxu0
    %801 = vmatpush.msra.mxu0 %v497
    %802 = vmatpush.msra.mxu0 %v494
    %803 = vmatpush.msra.mxu0 %v491
    %804 = vmatpush.msra.mxu0 %v488
    %805 = vmatpush.msra.mxu0 %v485
    %806 = vmatpush.msra.mxu0 %v482
    %807 = vmatpush.msra.mxu0 %v479
    %808 = vmatpush.msra.mxu0 %v476
    %809 = vmatpush.msra.mxu0 %v473
    %810 = vmatpush.msra.mxu0 %v470
    %811 = vmatpush.msra.mxu0 %v467
    %812 = vmatpush.msra.mxu0 %v464
    %813 = vmatpush.msra.mxu0 %v461
    %814 = vmatpush.msra.mxu0 %v458
    %815 = vmatpush.msra.mxu0 %v455
    %816 = vmatpush.msra.mxu0 %v452
    %817 = vmatmul.f32.gmra.mxu0 %v747
    %v818 = vpop.f32.mrf.mxu0
    %v819 = vadd.f32 %v799, %v818
    %820 = vdwg.mxu0
    %821 = vmatpush.msra.mxu0 %v545
    %822 = vmatpush.msra.mxu0 %v542
    %823 = vmatpush.msra.mxu0 %v539
    %824 = vmatpush.msra.mxu0 %v536
    %825 = vmatpush.msra.mxu0 %v533
    %826 = vmatpush.msra.mxu0 %v530
    %827 = vmatpush.msra.mxu0 %v527
    %828 = vmatpush.msra.mxu0 %v524
    %829 = vmatpush.msra.mxu0 %v521
    %830 = vmatpush.msra.mxu0 %v518
    %831 = vmatpush.msra.mxu0 %v515
    %832 = vmatpush.msra.mxu0 %v512
    %833 = vmatpush.msra.mxu0 %v509
    %834 = vmatpush.msra.mxu0 %v506
    %835 = vmatpush.msra.mxu0 %v503
    %836 = vmatpush.msra.mxu0 %v500
    %837 = vmatmul.f32.gmra.mxu0 %v748
    %v838 = vpop.f32.mrf.mxu0
    %v839 = vadd.f32 %v819, %v838
    %840 = vdwg.mxu0
    %841 = vmatpush.msra.mxu0 %v593
    %842 = vmatpush.msra.mxu0 %v590
    %843 = vmatpush.msra.mxu0 %v587
    %844 = vmatpush.msra.mxu0 %v584
    %845 = vmatpush.msra.mxu0 %v581
    %846 = vmatpush.msra.mxu0 %v578
    %847 = vmatpush.msra.mxu0 %v575
    %848 = vmatpush.msra.mxu0 %v572
    %849 = vmatpush.msra.mxu0 %v569
    %850 = vmatpush.msra.mxu0 %v566
    %851 = vmatpush.msra.mxu0 %v563
    %852 = vmatpush.msra.mxu0 %v560
    %853 = vmatpush.msra.mxu0 %v557
    %854 = vmatpush.msra.mxu0 %v554
    %855 = vmatpush.msra.mxu0 %v551
    %856 = vmatpush.msra.mxu0 %v548
    %857 = vmatmul.f32.gmra.mxu0 %v749
    %v858 = vpop.f32.mrf.mxu0
    %v859 = vadd.f32 %v839, %v858
    %860 = vdwg.mxu0
    %861 = vmatpush.msra.mxu0 %v641
    %862 = vmatpush.msra.mxu0 %v638
    %863 = vmatpush.msra.mxu0 %v635
    %864 = vmatpush.msra.mxu0 %v632
    %865 = vmatpush.msra.mxu0 %v629
    %866 = vmatpush.msra.mxu0 %v626
    %867 = vmatpush.msra.mxu0 %v623
    %868 = vmatpush.msra.mxu0 %v620
    %869 = vmatpush.msra.mxu0 %v617
    %870 = vmatpush.msra.mxu0 %v614
    %871 = vmatpush.msra.mxu0 %v611
    %872 = vmatpush.msra.mxu0 %v608
    %873 = vmatpush.msra.mxu0 %v605
    %874 = vmatpush.msra.mxu0 %v602
    %875 = vmatpush.msra.mxu0 %v599
    %876 = vmatpush.msra.mxu0 %v596
    %877 = vmatmul.f32.gmra.mxu0 %v750
    %v878 = vpop.f32.mrf.mxu0
    %v879 = vadd.f32 %v859, %v878
    %880 = vdwg.mxu0
    %881 = vmatpush.msra.mxu0 %v689
    %882 = vmatpush.msra.mxu0 %v686
    %883 = vmatpush.msra.mxu0 %v683
    %884 = vmatpush.msra.mxu0 %v680
    %885 = vmatpush.msra.mxu0 %v677
    %886 = vmatpush.msra.mxu0 %v674
    %887 = vmatpush.msra.mxu0 %v671
    %888 = vmatpush.msra.mxu0 %v668
    %889 = vmatpush.msra.mxu0 %v665
    %890 = vmatpush.msra.mxu0 %v662
    %891 = vmatpush.msra.mxu0 %v659
    %892 = vmatpush.msra.mxu0 %v656
    %893 = vmatpush.msra.mxu0 %v653
    %894 = vmatpush.msra.mxu0 %v650
    %895 = vmatpush.msra.mxu0 %v647
    %896 = vmatpush.msra.mxu0 %v644
    %897 = vmatmul.f32.gmra.mxu0 %v751
    %v898 = vpop.f32.mrf.mxu0
    %v899 = vadd.f32 %v879, %v898
    %900 = vdwg.mxu0
    %901 = vmatpush.msra.mxu0 %v737
    %902 = vmatpush.msra.mxu0 %v734
    %903 = vmatpush.msra.mxu0 %v731
    %904 = vmatpush.msra.mxu0 %v728
    %905 = vmatpush.msra.mxu0 %v725
    %906 = vmatpush.msra.mxu0 %v722
    %907 = vmatpush.msra.mxu0 %v719
    %908 = vmatpush.msra.mxu0 %v716
    %909 = vmatpush.msra.mxu0 %v713
    %910 = vmatpush.msra.mxu0 %v710
    %911 = vmatpush.msra.mxu0 %v707
    %912 = vmatpush.msra.mxu0 %v704
    %913 = vmatpush.msra.mxu0 %v701
    %914 = vmatpush.msra.mxu0 %v698
    %915 = vmatpush.msra.mxu0 %v695
    %916 = vmatpush.msra.mxu0 %v692
    %917 = vmatmul.f32.gmra.mxu0 %v752
    %v918 = vpop.f32.mrf.mxu0
    %v919 = vadd.f32 %v899, %v918
    %920 = vdwg.mxu0
    %921 = vmatpush.msra.mxu0 %v402
    %922 = vmatpush.msra.mxu0 %v399
    %923 = vmatpush.msra.mxu0 %v396
    %924 = vmatpush.msra.mxu0 %v393
    %925 = vmatpush.msra.mxu0 %v390
    %926 = vmatpush.msra.mxu0 %v387
    %927 = vmatpush.msra.mxu0 %v384
    %928 = vmatpush.msra.mxu0 %v381
    %929 = vmatpush.msra.mxu0 %v378
    %930 = vmatpush.msra.mxu0 %v375
    %931 = vmatpush.msra.mxu0 %v372
    %932 = vmatpush.msra.mxu0 %v369
    %933 = vmatpush.msra.mxu0 %v366
    %934 = vmatpush.msra.mxu0 %v363
    %935 = vmatpush.msra.mxu0 %v360
    %936 = vmatpush.msra.mxu0 %v357
    %937 = vmatmul.f32.gmra.mxu0 %v745
    %v938 = vpop.f32.mrf.mxu0
    %v939 = vadd.f32 0.0, %v938
    %940 = vdwg.mxu0
    %941 = vmatpush.msra.mxu0 %v450
    %942 = vmatpush.msra.mxu0 %v447
    %943 = vmatpush.msra.mxu0 %v444
    %944 = vmatpush.msra.mxu0 %v441
    %945 = vmatpush.msra.mxu0 %v438
    %946 = vmatpush.msra.mxu0 %v435
    %947 = vmatpush.msra.mxu0 %v432
    %948 = vmatpush.msra.mxu0 %v429
    %949 = vmatpush.msra.mxu0 %v426
    %950 = vmatpush.msra.mxu0 %v423
    %951 = vmatpush.msra.mxu0 %v420
    %952 = vmatpush.msra.mxu0 %v417
    %953 = vmatpush.msra.mxu0 %v414
    %954 = vmatpush.msra.mxu0 %v411
    %955 = vmatpush.msra.mxu0 %v408
    %956 = vmatpush.msra.mxu0 %v405
    %957 = vmatmul.f32.gmra.mxu0 %v746
    %v958 = vpop.f32.mrf.mxu0
    %v959 = vadd.f32 %v939, %v958
    %960 = vdwg.mxu0
    %961 = vmatpush.msra.mxu0 %v498
    %962 = vmatpush.msra.mxu0 %v495
    %963 = vmatpush.msra.mxu0 %v492
    %964 = vmatpush.msra.mxu0 %v489
    %965 = vmatpush.msra.mxu0 %v486
    %966 = vmatpush.msra.mxu0 %v483
    %967 = vmatpush.msra.mxu0 %v480
    %968 = vmatpush.msra.mxu0 %v477
    %969 = vmatpush.msra.mxu0 %v474
    %970 = vmatpush.msra.mxu0 %v471
    %971 = vmatpush.msra.mxu0 %v468
    %972 = vmatpush.msra.mxu0 %v465
    %973 = vmatpush.msra.mxu0 %v462
    %974 = vmatpush.msra.mxu0 %v459
    %975 = vmatpush.msra.mxu0 %v456
    %976 = vmatpush.msra.mxu0 %v453
    %977 = vmatmul.f32.gmra.mxu0 %v747
    %v978 = vpop.f32.mrf.mxu0
    %v979 = vadd.f32 %v959, %v978
    %980 = vdwg.mxu0
    %981 = vmatpush.msra.mxu0 %v546
    %982 = vmatpush.msra.mxu0 %v543
    %983 = vmatpush.msra.mxu0 %v540
    %984 = vmatpush.msra.mxu0 %v537
    %985 = vmatpush.msra.mxu0 %v534
    %986 = vmatpush.msra.mxu0 %v531
    %987 = vmatpush.msra.mxu0 %v528
    %988 = vmatpush.msra.mxu0 %v525
    %989 = vmatpush.msra.mxu0 %v522
    %990 = vmatpush.msra.mxu0 %v519
    %991 = vmatpush.msra.mxu0 %v516
    %992 = vmatpush.msra.mxu0 %v513
    %993 = vmatpush.msra.mxu0 %v510
    %994 = vmatpush.msra.mxu0 %v507
    %995 = vmatpush.msra.mxu0 %v504
    %996 = vmatpush.msra.mxu0 %v501
    %997 = vmatmul.f32.gmra.mxu0 %v748
    %v998 = vpop.f32.mrf.mxu0
    %v999 = vadd.f32 %v979, %v998
    %1000 = vdwg.mxu0
    %1001 = vmatpush.msra.mxu0 %v594
    %1002 = vmatpush.msra.mxu0 %v591
    %1003 = vmatpush.msra.mxu0 %v588
    %1004 = vmatpush.msra.mxu0 %v585
    %1005 = vmatpush.msra.mxu0 %v582
    %1006 = vmatpush.msra.mxu0 %v579
    %1007 = vmatpush.msra.mxu0 %v576
    %1008 = vmatpush.msra.mxu0 %v573
    %1009 = vmatpush.msra.mxu0 %v570
    %1010 = vmatpush.msra.mxu0 %v567
    %1011 = vmatpush.msra.mxu0 %v564
    %1012 = vmatpush.msra.mxu0 %v561
    %1013 = vmatpush.msra.mxu0 %v558
    %1014 = vmatpush.msra.mxu0 %v555
    %1015 = vmatpush.msra.mxu0 %v552
    %1016 = vmatpush.msra.mxu0 %v549
    %1017 = vmatmul.f32.gmra.mxu0 %v749
    %v1018 = vpop.f32.mrf.mxu0
    %v1019 = vadd.f32 %v999, %v1018
    %1020 = vdwg.mxu0
    %1021 = vmatpush.msra.mxu0 %v642
    %1022 = vmatpush.msra.mxu0 %v639
    %1023 = vmatpush.msra.mxu0 %v636
    %1024 = vmatpush.msra.mxu0 %v633
    %1025 = vmatpush.msra.mxu0 %v630
    %1026 = vmatpush.msra.mxu0 %v627
    %1027 = vmatpush.msra.mxu0 %v624
    %1028 = vmatpush.msra.mxu0 %v621
    %1029 = vmatpush.msra.mxu0 %v618
    %1030 = vmatpush.msra.mxu0 %v615
    %1031 = vmatpush.msra.mxu0 %v612
    %1032 = vmatpush.msra.mxu0 %v609
    %1033 = vmatpush.msra.mxu0 %v606
    %1034 = vmatpush.msra.mxu0 %v603
    %1035 = vmatpush.msra.mxu0 %v600
    %1036 = vmatpush.msra.mxu0 %v597
    %1037 = vmatmul.f32.gmra.mxu0 %v750
    %v1038 = vpop.f32.mrf.mxu0
    %v1039 = vadd.f32 %v1019, %v1038
    %1040 = vdwg.mxu0
    %1041 = vmatpush.msra.mxu0 %v690
    %1042 = vmatpush.msra.mxu0 %v687
    %1043 = vmatpush.msra.mxu0 %v684
    %1044 = vmatpush.msra.mxu0 %v681
    %1045 = vmatpush.msra.mxu0 %v678
    %1046 = vmatpush.msra.mxu0 %v675
    %1047 = vmatpush.msra.mxu0 %v672
    %1048 = vmatpush.msra.mxu0 %v669
    %1049 = vmatpush.msra.mxu0 %v666
    %1050 = vmatpush.msra.mxu0 %v663
    %1051 = vmatpush.msra.mxu0 %v660
    %1052 = vmatpush.msra.mxu0 %v657
    %1053 = vmatpush.msra.mxu0 %v654
    %1054 = vmatpush.msra.mxu0 %v651
    %1055 = vmatpush.msra.mxu0 %v648
    %1056 = vmatpush.msra.mxu0 %v645
    %1057 = vmatmul.f32.gmra.mxu0 %v751
    %v1058 = vpop.f32.mrf.mxu0
    %v1059 = vadd.f32 %v1039, %v1058
    %1060 = vdwg.mxu0
    %1061 = vmatpush.msra.mxu0 %v738
    %1062 = vmatpush.msra.mxu0 %v735
    %1063 = vmatpush.msra.mxu0 %v732
    %1064 = vmatpush.msra.mxu0 %v729
    %1065 = vmatpush.msra.mxu0 %v726
    %1066 = vmatpush.msra.mxu0 %v723
    %1067 = vmatpush.msra.mxu0 %v720
    %1068 = vmatpush.msra.mxu0 %v717
    %1069 = vmatpush.msra.mxu0 %v714
    %1070 = vmatpush.msra.mxu0 %v711
    %1071 = vmatpush.msra.mxu0 %v708
    %1072 = vmatpush.msra.mxu0 %v705
    %1073 = vmatpush.msra.mxu0 %v702
    %1074 = vmatpush.msra.mxu0 %v699
    %1075 = vmatpush.msra.mxu0 %v696
    %1076 = vmatpush.msra.mxu0 %v693
    %1077 = vmatmul.f32.gmra.mxu0 %v752
    %v1078 = vpop.f32.mrf.mxu0
    %v1079 = vadd.f32 %v1059, %v1078
    %1080 = vdwg.mxu0
    %1081 = vmatpush.msra.mxu0 %v403
    %1082 = vmatpush.msra.mxu0 %v400
    %1083 = vmatpush.msra.mxu0 %v397
    %1084 = vmatpush.msra.mxu0 %v394
    %1085 = vmatpush.msra.mxu0 %v391
    %1086 = vmatpush.msra.mxu0 %v388
    %1087 = vmatpush.msra.mxu0 %v385
    %1088 = vmatpush.msra.mxu0 %v382
    %1089 = vmatpush.msra.mxu0 %v379
    %1090 = vmatpush.msra.mxu0 %v376
    %1091 = vmatpush.msra.mxu0 %v373
    %1092 = vmatpush.msra.mxu0 %v370
    %1093 = vmatpush.msra.mxu0 %v367
    %1094 = vmatpush.msra.mxu0 %v364
    %1095 = vmatpush.msra.mxu0 %v361
    %1096 = vmatpush.msra.mxu0 %v358
    %1097 = vmatmul.f32.gmra.mxu0 %v745
    %v1098 = vpop.f32.mrf.mxu0
    %v1099 = vadd.f32 0.0, %v1098
    %1100 = vdwg.mxu0
    %1101 = vmatpush.msra.mxu0 %v451
    %1102 = vmatpush.msra.mxu0 %v448
    %1103 = vmatpush.msra.mxu0 %v445
    %1104 = vmatpush.msra.mxu0 %v442
    %1105 = vmatpush.msra.mxu0 %v439
    %1106 = vmatpush.msra.mxu0 %v436
    %1107 = vmatpush.msra.mxu0 %v433
    %1108 = vmatpush.msra.mxu0 %v430
    %1109 = vmatpush.msra.mxu0 %v427
    %1110 = vmatpush.msra.mxu0 %v424
    %1111 = vmatpush.msra.mxu0 %v421
    %1112 = vmatpush.msra.mxu0 %v418
    %1113 = vmatpush.msra.mxu0 %v415
    %1114 = vmatpush.msra.mxu0 %v412
    %1115 = vmatpush.msra.mxu0 %v409
    %1116 = vmatpush.msra.mxu0 %v406
    %1117 = vmatmul.f32.gmra.mxu0 %v746
    %v1118 = vpop.f32.mrf.mxu0
    %v1119 = vadd.f32 %v1099, %v1118
    %1120 = vdwg.mxu0
    %1121 = vmatpush.msra.mxu0 %v499
    %1122 = vmatpush.msra.mxu0 %v496
    %1123 = vmatpush.msra.mxu0 %v493
    %1124 = vmatpush.msra.mxu0 %v490
    %1125 = vmatpush.msra.mxu0 %v487
    %1126 = vmatpush.msra.mxu0 %v484
    %1127 = vmatpush.msra.mxu0 %v481
    %1128 = vmatpush.msra.mxu0 %v478
    %1129 = vmatpush.msra.mxu0 %v475
    %1130 = vmatpush.msra.mxu0 %v472
    %1131 = vmatpush.msra.mxu0 %v469
    %1132 = vmatpush.msra.mxu0 %v466
    %1133 = vmatpush.msra.mxu0 %v463
    %1134 = vmatpush.msra.mxu0 %v460
    %1135 = vmatpush.msra.mxu0 %v457
    %1136 = vmatpush.msra.mxu0 %v454
    %1137 = vmatmul.f32.gmra.mxu0 %v747
    %v1138 = vpop.f32.mrf.mxu0
    %v1139 = vadd.f32 %v1119, %v1138
    %1140 = vdwg.mxu0
    %1141 = vmatpush.msra.mxu0 %v547
    %1142 = vmatpush.msra.mxu0 %v544
    %1143 = vmatpush.msra.mxu0 %v541
    %1144 = vmatpush.msra.mxu0 %v538
    %1145 = vmatpush.msra.mxu0 %v535
    %1146 = vmatpush.msra.mxu0 %v532
    %1147 = vmatpush.msra.mxu0 %v529
    %1148 = vmatpush.msra.mxu0 %v526
    %1149 = vmatpush.msra.mxu0 %v523
    %1150 = vmatpush.msra.mxu0 %v520
    %1151 = vmatpush.msra.mxu0 %v517
    %1152 = vmatpush.msra.mxu0 %v514
    %1153 = vmatpush.msra.mxu0 %v511
    %1154 = vmatpush.msra.mxu0 %v508
    %1155 = vmatpush.msra.mxu0 %v505
    %1156 = vmatpush.msra.mxu0 %v502
    %1157 = vmatmul.f32.gmra.mxu0 %v748
    %v1158 = vpop.f32.mrf.mxu0
    %v1159 = vadd.f32 %v1139, %v1158
    %1160 = vdwg.mxu0
    %1161 = vmatpush.msra.mxu0 %v595
    %1162 = vmatpush.msra.mxu0 %v592
    %1163 = vmatpush.msra.mxu0 %v589
    %1164 = vmatpush.msra.mxu0 %v586
    %1165 = vmatpush.msra.mxu0 %v583
    %1166 = vmatpush.msra.mxu0 %v580
    %1167 = vmatpush.msra.mxu0 %v577
    %1168 = vmatpush.msra.mxu0 %v574
    %1169 = vmatpush.msra.mxu0 %v571
    %1170 = vmatpush.msra.mxu0 %v568
    %1171 = vmatpush.msra.mxu0 %v565
    %1172 = vmatpush.msra.mxu0 %v562
    %1173 = vmatpush.msra.mxu0 %v559
    %1174 = vmatpush.msra.mxu0 %v556
    %1175 = vmatpush.msra.mxu0 %v553
    %1176 = vmatpush.msra.mxu0 %v550
    %1177 = vmatmul.f32.gmra.mxu0 %v749
    %v1178 = vpop.f32.mrf.mxu0
    %v1179 = vadd.f32 %v1159, %v1178
    %1180 = vdwg.mxu0
    %1181 = vmatpush.msra.mxu0 %v643
    %1182 = vmatpush.msra.mxu0 %v640
    %1183 = vmatpush.msra.mxu0 %v637
    %1184 = vmatpush.msra.mxu0 %v634
    %1185 = vmatpush.msra.mxu0 %v631
    %1186 = vmatpush.msra.mxu0 %v628
    %1187 = vmatpush.msra.mxu0 %v625
    %1188 = vmatpush.msra.mxu0 %v622
    %1189 = vmatpush.msra.mxu0 %v619
    %1190 = vmatpush.msra.mxu0 %v616
    %1191 = vmatpush.msra.mxu0 %v613
    %1192 = vmatpush.msra.mxu0 %v610
    %1193 = vmatpush.msra.mxu0 %v607
    %1194 = vmatpush.msra.mxu0 %v604
    %1195 = vmatpush.msra.mxu0 %v601
    %1196 = vmatpush.msra.mxu0 %v598
    %1197 = vmatmul.f32.gmra.mxu0 %v750
    %v1198 = vpop.f32.mrf.mxu0
    %v1199 = vadd.f32 %v1179, %v1198
    %1200 = vdwg.mxu0
    %1201 = vmatpush.msra.mxu0 %v691
    %1202 = vmatpush.msra.mxu0 %v688
    %1203 = vmatpush.msra.mxu0 %v685
    %1204 = vmatpush.msra.mxu0 %v682
    %1205 = vmatpush.msra.mxu0 %v679
    %1206 = vmatpush.msra.mxu0 %v676
    %1207 = vmatpush.msra.mxu0 %v673
    %1208 = vmatpush.msra.mxu0 %v670
    %1209 = vmatpush.msra.mxu0 %v667
    %1210 = vmatpush.msra.mxu0 %v664
    %1211 = vmatpush.msra.mxu0 %v661
    %1212 = vmatpush.msra.mxu0 %v658
    %1213 = vmatpush.msra.mxu0 %v655
    %1214 = vmatpush.msra.mxu0 %v652
    %1215 = vmatpush.msra.mxu0 %v649
    %1216 = vmatpush.msra.mxu0 %v646
    %1217 = vmatmul.f32.gmra.mxu0 %v751
    %v1218 = vpop.f32.mrf.mxu0
    %v1219 = vadd.f32 %v1199, %v1218
    %1220 = vdwg.mxu0
    %1221 = vmatpush.msra.mxu0 %v739
    %1222 = vmatpush.msra.mxu0 %v736
    %1223 = vmatpush.msra.mxu0 %v733
    %1224 = vmatpush.msra.mxu0 %v730
    %1225 = vmatpush.msra.mxu0 %v727
    %1226 = vmatpush.msra.mxu0 %v724
    %1227 = vmatpush.msra.mxu0 %v721
    %1228 = vmatpush.msra.mxu0 %v718
    %1229 = vmatpush.msra.mxu0 %v715
    %1230 = vmatpush.msra.mxu0 %v712
    %1231 = vmatpush.msra.mxu0 %v709
    %1232 = vmatpush.msra.mxu0 %v706
    %1233 = vmatpush.msra.mxu0 %v703
    %1234 = vmatpush.msra.mxu0 %v700
    %1235 = vmatpush.msra.mxu0 %v697
    %1236 = vmatpush.msra.mxu0 %v694
    %1237 = vmatmul.f32.gmra.mxu0 %v752
    %v1238 = vpop.f32.mrf.mxu0
    %v1239 = vadd.f32 %v1219, %v1238
    %1240 = vdwg.mxu0
    %v1241 = vmul.f32 %v95, %v95
    %v1242 = vmul.f32 %v96, %v96
    %1245 = vst [vmem:[#allocation1] ss:$4 sm:$0xff] %v1241
    %s1246 = scalar_lea.vmem [#allocation1], 32
    %1247 = vst [vmem:[%s1246] ss:$4 sm:$0xff] %v1242
    %v1248 = vld.sshfl [vmem:[#allocation1] sm:$0xff pattern:$0x73625140]
    %v1249 = vld.sshfl [vmem:[#allocation1 + $0x8] sm:$0xff pattern:$0x73625140]
    %v1250 = vld.sshfl [vmem:[#allocation1 + $0x10] sm:$0xff pattern:$0x73625140]
    %v1251 = vld.sshfl [vmem:[#allocation1 + $0x18] sm:$0xff pattern:$0x73625140]
    %v1252 = vld.sshfl [vmem:[#allocation1 + $0x20] sm:$0xff pattern:$0x73625140]
    %v1253 = vld.sshfl [vmem:[#allocation1 + $0x28] sm:$0xff pattern:$0x73625140]
    %v1254 = vld.sshfl [vmem:[#allocation1 + $0x30] sm:$0xff pattern:$0x73625140]
    %v1255 = vld.sshfl [vmem:[#allocation1 + $0x38] sm:$0xff pattern:$0x73625140]
    %vm1264 = vcmask 1041408
    %v1265 = vsel %vm1264, %v1248, 0.0
    %v1266 = vsel %vm1264, %v1249, 0.0
    %v1267 = vadd.f32 %v1265, %v1266
    %v1268 = vsel %vm1264, %v1250, 0.0
    %v1269 = vadd.f32 %v1267, %v1268
    %v1270 = vsel %vm1264, %v1251, 0.0
    %v1271 = vadd.f32 %v1269, %v1270
    %v1272 = vsel %vm1264, %v1252, 0.0
    %v1273 = vadd.f32 %v1271, %v1272
    %v1274 = vsel %vm1264, %v1253, 0.0
    %v1275 = vadd.f32 %v1273, %v1274
    %v1276 = vsel %vm1264, %v1254, 0.0
    %v1277 = vadd.f32 %v1275, %v1276
    %v1278 = vsel %vm1264, %v1255, 0.0
    %v1279 = vadd.f32 %v1277, %v1278
    %1280 = vadd.xlane.f32.xlu0 %v1279
    %v1281 = vpop.xlane.xlu0 %1280
    %v1282 = vrsqrt.pop %v1281
    %v1283 = vmul.f32 %v1282, %v1281
    %v1284 = vmul.f32 %v1283, %v1282
    %v1285 = vmul.f32 0.5, %v1284
    %v1286 = vsub.f32 1.5, %v1285
    %v1287 = vmul.f32 %v1282, %v1286
    %v1288 = vmul.f32 %v1281, %v1287
    %vm1289 = vcmp.eq.f32.partialorder %v1281, inf
    %v1290 = vsel %vm1289, %v1281, %v1288
    %vm1291 = vcmp.eq.f32.partialorder %v1281, 0.0
    %v1292 = vand.u32 %v1281, 2147483648
    %v1293 = vsel %vm1291, %v1292, %v1290
    %v1294 = vperm.slane %v97, 0
    %v1295 = vperm.slane %v98, 0
    %v1296 = vperm.slane %v99, 0
    %v1297 = vmul.f32 %v1293, %v1294
    %v1298 = vmul.f32 %v1293, %v1295
    %v1299 = vmul.f32 %v1293, %v1296
    %v1300 = vadd.f32 %v1297, 1e-08
    %v1301 = vadd.f32 %v1298, 1e-08
    %v1302 = vadd.f32 %v1299, 1e-08
    %v1303 = vrcp.pop %v1300
    %v1304 = vmul.f32 %v1300, %v1303
    %v1305 = vsub.f32 1.0, %v1304
    %v1306 = vmul.f32 %v1303, %v1305
    %v1307 = vadd.f32 %v1303, %v1306
    %vm1308 = vweird.f32 %v1300
    %vm1309 = vweird.f32 %v1303
    %vm1310 = vmor %vm1308, %vm1309
    %v1311 = vsel %vm1310, %v1303, %v1307
    %v1312 = vand.u32 2147483647, %v1300
    %vm1313 = vcmp.eq.f32.partialorder %v1312, 8.507059e+37
    %v1314 = vand.u32 %v1300, 2147483648
    %v1315 = vor.u32 1.1754944e-38, %v1314
    %v1316 = vsel %vm1313, %v1315, %v1311
    %v1317 = vrcp.pop %v1301
    %v1318 = vmul.f32 %v1301, %v1317
    %v1319 = vsub.f32 1.0, %v1318
    %v1320 = vmul.f32 %v1317, %v1319
    %v1321 = vadd.f32 %v1317, %v1320
    %vm1322 = vweird.f32 %v1301
    %vm1323 = vweird.f32 %v1317
    %vm1324 = vmor %vm1322, %vm1323
    %v1325 = vsel %vm1324, %v1317, %v1321
    %v1326 = vand.u32 2147483647, %v1301
    %vm1327 = vcmp.eq.f32.partialorder %v1326, 8.507059e+37
    %v1328 = vand.u32 %v1301, 2147483648
    %v1329 = vor.u32 1.1754944e-38, %v1328
    %v1330 = vsel %vm1327, %v1329, %v1325
    %v1331 = vrcp.pop %v1302
    %v1332 = vmul.f32 %v1302, %v1331
    %v1333 = vsub.f32 1.0, %v1332
    %v1334 = vmul.f32 %v1331, %v1333
    %v1335 = vadd.f32 %v1331, %v1334
    %vm1336 = vweird.f32 %v1302
    %vm1337 = vweird.f32 %v1331
    %vm1338 = vmor %vm1336, %vm1337
    %v1339 = vsel %vm1338, %v1331, %v1335
    %v1340 = vand.u32 2147483647, %v1302
    %vm1341 = vcmp.eq.f32.partialorder %v1340, 8.507059e+37
    %v1342 = vand.u32 %v1302, 2147483648
    %v1343 = vor.u32 1.1754944e-38, %v1342
    %v1344 = vsel %vm1341, %v1343, %v1339
    %v1345 = vmul.f32 %v919, %v1316
    %v1346 = vmul.f32 %v1079, %v1330
    %v1347 = vmul.f32 %v1239, %v1344
    %v1348 = vmax.f32 %v1345, 0.0
    %v1349 = vmax.f32 %v1346, 0.0
    %v1350 = vmax.f32 %v1347, 0.0
    %v1351 = vsel %vm1264, %v1348, 0.0
    %v1352 = vrot.slane %v1351, 4
    %v1353 = vadd.f32 %v1351, %v1352
    %v1354 = vrot.slane %v1353, 2
    %v1355 = vadd.f32 %v1353, %v1354
    %v1356 = vrot.slane %v1355, 1
    %v1357 = vadd.f32 %v1355, %v1356
    %v1358 = vsel %vm1264, %v1349, 0.0
    %v1359 = vrot.slane %v1358, 4
    %v1360 = vadd.f32 %v1358, %v1359
    %v1361 = vrot.slane %v1360, 2
    %v1362 = vadd.f32 %v1360, %v1361
    %v1363 = vrot.slane %v1362, 1
    %v1364 = vadd.f32 %v1362, %v1363
    %v1365 = vsel %vm1264, %v1350, 0.0
    %v1366 = vrot.slane %v1365, 4
    %v1367 = vadd.f32 %v1365, %v1366
    %v1368 = vrot.slane %v1367, 2
    %v1369 = vadd.f32 %v1367, %v1368
    %v1370 = vrot.slane %v1369, 1
    %v1371 = vadd.f32 %v1369, %v1370
    %v1372 = vrcp.pop 2.0
    %v1373 = vmul.f32 2.0, %v1372
    %v1374 = vsub.f32 1.0, %v1373
    %v1375 = vmul.f32 %v1372, %v1374
    %v1376 = vadd.f32 %v1372, %v1375
    %vm1377 = vweird.f32 %v1372
    %v1378 = vsel %vm1377, %v1372, %v1376
    %v1379 = vmul.f32 %v1357, %v1378
    %v1380 = vmul.f32 %v1364, %v1378
    %v1381 = vmul.f32 %v1371, %v1378
    %v1382 = vsub.f32 %v1348, %v1379
    %v1383 = vsub.f32 %v1349, %v1380
    %v1384 = vsub.f32 %v1350, %v1381
    %v1385 = vmul.f32 %v1382, %v1382
    %v1386 = vmul.f32 %v1383, %v1383
    %v1387 = vmul.f32 %v1384, %v1384
    %v1388 = vsel %vm1264, %v1385, 0.0
    %v1389 = vrot.slane %v1388, 4
    %v1390 = vadd.f32 %v1388, %v1389
    %v1391 = vrot.slane %v1390, 2
    %v1392 = vadd.f32 %v1390, %v1391
    %v1393 = vrot.slane %v1392, 1
    %v1394 = vadd.f32 %v1392, %v1393
    %v1395 = vsel %vm1264, %v1386, 0.0
    %v1396 = vrot.slane %v1395, 4
    %v1397 = vadd.f32 %v1395, %v1396
    %v1398 = vrot.slane %v1397, 2
    %v1399 = vadd.f32 %v1397, %v1398
    %v1400 = vrot.slane %v1399, 1
    %v1401 = vadd.f32 %v1399, %v1400
    %v1402 = vsel %vm1264, %v1387, 0.0
    %v1403 = vrot.slane %v1402, 4
    %v1404 = vadd.f32 %v1402, %v1403
    %v1405 = vrot.slane %v1404, 2
    %v1406 = vadd.f32 %v1404, %v1405
    %v1407 = vrot.slane %v1406, 1
    %v1408 = vadd.f32 %v1406, %v1407
    %v1409 = vmul.f32 %v1394, %v1378
    %v1410 = vmul.f32 %v1401, %v1378
    %v1411 = vmul.f32 %v1408, %v1378
    %v1412 = vadd.f32 %v1409, 1e-05
    %v1413 = vadd.f32 %v1410, 1e-05
    %v1414 = vadd.f32 %v1411, 1e-05
    %v1415 = vrsqrt.pop %v1412
    %v1416 = vmul.f32 %v1415, %v1412
    %v1417 = vmul.f32 %v1416, %v1415
    %v1418 = vmul.f32 0.5, %v1417
    %v1419 = vsub.f32 1.5, %v1418
    %v1420 = vmul.f32 %v1415, %v1419
    %vm1421 = vweird.f32 %v1412
    %vm1422 = vweird.f32 %v1415
    %vm1423 = vmor %vm1421, %vm1422
    %v1424 = vsel %vm1423, %v1415, %v1420
    %v1425 = vrsqrt.pop %v1413
    %v1426 = vmul.f32 %v1425, %v1413
    %v1427 = vmul.f32 %v1426, %v1425
    %v1428 = vmul.f32 0.5, %v1427
    %v1429 = vsub.f32 1.5, %v1428
    %v1430 = vmul.f32 %v1425, %v1429
    %vm1431 = vweird.f32 %v1413
    %vm1432 = vweird.f32 %v1425
    %vm1433 = vmor %vm1431, %vm1432
    %v1434 = vsel %vm1433, %v1425, %v1430
    %v1435 = vrsqrt.pop %v1414
    %v1436 = vmul.f32 %v1435, %v1414
    %v1437 = vmul.f32 %v1436, %v1435
    %v1438 = vmul.f32 0.5, %v1437
    %v1439 = vsub.f32 1.5, %v1438
    %v1440 = vmul.f32 %v1435, %v1439
    %vm1441 = vweird.f32 %v1414
    %vm1442 = vweird.f32 %v1435
    %vm1443 = vmor %vm1441, %vm1442
    %v1444 = vsel %vm1443, %v1435, %v1440
    %v1445 = vmul.f32 %v1382, %v1424
    %v1446 = vmul.f32 %v1383, %v1434
    %v1447 = vmul.f32 %v1384, %v1444
    %v1448 = vperm.slane %v97, 2
    %v1449 = vperm.slane %v98, 2
    %v1450 = vperm.slane %v99, 2
    %v1451 = vmul.f32 %v1445, %v1448
    %v1452 = vmul.f32 %v1446, %v1449
    %v1453 = vmul.f32 %v1447, %v1450
    %v1454 = vperm.slane %v97, 3
    %v1455 = vperm.slane %v98, 3
    %v1456 = vperm.slane %v99, 3
    %v1457 = vadd.f32 %v1451, %v1454
    %v1458 = vadd.f32 %v1452, %v1455
    %v1459 = vadd.f32 %v1453, %v1456
    %v1460 = vld [vmem:[#allocation7] sm:$0xff]
    %v1461 = vld [vmem:[#allocation7 + $0x8] sm:$0xf]
    %v1462 = vld [vmem:[#allocation7 + $0xc] sm:$0xff]
    %v1463 = vld [vmem:[#allocation7 + $0x14] sm:$0xf]
    %v1464 = vld [vmem:[#allocation7 + $0x18] sm:$0xff]
    %v1465 = vld [vmem:[#allocation7 + $0x20] sm:$0xf]
    %v1466 = vld [vmem:[#allocation7 + $0x24] sm:$0xff]
    %v1467 = vld [vmem:[#allocation7 + $0x2c] sm:$0xf]
    %v1468 = vld [vmem:[#allocation7 + $0x30] sm:$0xff]
    %v1469 = vld [vmem:[#allocation7 + $0x38] sm:$0xf]
    %v1470 = vld [vmem:[#allocation7 + $0x3c] sm:$0xff]
    %v1471 = vld [vmem:[#allocation7 + $0x44] sm:$0xf]
    %v1472 = vld [vmem:[#allocation7 + $0x48] sm:$0xff]
    %v1473 = vld [vmem:[#allocation7 + $0x50] sm:$0xf]
    %v1474 = vld [vmem:[#allocation7 + $0x54] sm:$0xff]
    %v1475 = vld [vmem:[#allocation7 + $0x5c] sm:$0xf]
    %v1476 = vld [vmem:[#allocation7 + $0x60] sm:$0xff]
    %v1477 = vld [vmem:[#allocation7 + $0x68] sm:$0xf]
    %v1478 = vld [vmem:[#allocation7 + $0x6c] sm:$0xff]
    %v1479 = vld [vmem:[#allocation7 + $0x74] sm:$0xf]
    %v1480 = vld [vmem:[#allocation7 + $0x78] sm:$0xff]
    %v1481 = vld [vmem:[#allocation7 + $0x80] sm:$0xf]
    %v1482 = vld [vmem:[#allocation7 + $0x84] sm:$0xff]
    %v1483 = vld [vmem:[#allocation7 + $0x8c] sm:$0xf]
    %v1484 = vld [vmem:[#allocation7 + $0x90] sm:$0xff]
    %v1485 = vld [vmem:[#allocation7 + $0x98] sm:$0xf]
    %v1486 = vld [vmem:[#allocation7 + $0x9c] sm:$0xff]
    %v1487 = vld [vmem:[#allocation7 + $0xa4] sm:$0xf]
    %v1488 = vld [vmem:[#allocation7 + $0xa8] sm:$0xff]
    %v1489 = vld [vmem:[#allocation7 + $0xb0] sm:$0xf]
    %v1490 = vld [vmem:[#allocation7 + $0xb4] sm:$0xff]
    %v1491 = vld [vmem:[#allocation7 + $0xbc] sm:$0xf]
    %v1492 = vld [vmem:[#allocation7 + $0xc0] sm:$0xff]
    %v1493 = vld [vmem:[#allocation7 + $0xc8] sm:$0xf]
    %v1494 = vld [vmem:[#allocation7 + $0xcc] sm:$0xff]
    %v1495 = vld [vmem:[#allocation7 + $0xd4] sm:$0xf]
    %v1496 = vld [vmem:[#allocation7 + $0xd8] sm:$0xff]
    %v1497 = vld [vmem:[#allocation7 + $0xe0] sm:$0xf]
    %v1498 = vld [vmem:[#allocation7 + $0xe4] sm:$0xff]
    %v1499 = vld [vmem:[#allocation7 + $0xec] sm:$0xf]
    %v1500 = vld [vmem:[#allocation7 + $0xf0] sm:$0xff]
    %v1501 = vld [vmem:[#allocation7 + $0xf8] sm:$0xf]
    %v1502 = vld [vmem:[#allocation7 + $0xfc] sm:$0xff]
    %v1503 = vld [vmem:[#allocation7 + $0x104] sm:$0xf]
    %v1504 = vld [vmem:[#allocation7 + $0x108] sm:$0xff]
    %v1505 = vld [vmem:[#allocation7 + $0x110] sm:$0xf]
    %v1506 = vld [vmem:[#allocation7 + $0x114] sm:$0xff]
    %v1507 = vld [vmem:[#allocation7 + $0x11c] sm:$0xf]
    %v1508 = vld [vmem:[#allocation7 + $0x120] sm:$0xff]
    %v1509 = vld [vmem:[#allocation7 + $0x128] sm:$0xf]
    %v1510 = vld [vmem:[#allocation7 + $0x12c] sm:$0xff]
    %v1511 = vld [vmem:[#allocation7 + $0x134] sm:$0xf]
    %v1512 = vld [vmem:[#allocation7 + $0x138] sm:$0xff]
    %v1513 = vld [vmem:[#allocation7 + $0x140] sm:$0xf]
    %v1514 = vld [vmem:[#allocation7 + $0x144] sm:$0xff]
    %v1515 = vld [vmem:[#allocation7 + $0x14c] sm:$0xf]
    %v1516 = vld [vmem:[#allocation7 + $0x150] sm:$0xff]
    %v1517 = vld [vmem:[#allocation7 + $0x158] sm:$0xf]
    %v1518 = vld [vmem:[#allocation7 + $0x15c] sm:$0xff]
    %v1519 = vld [vmem:[#allocation7 + $0x164] sm:$0xf]
    %v1520 = vld [vmem:[#allocation7 + $0x168] sm:$0xff]
    %v1521 = vld [vmem:[#allocation7 + $0x170] sm:$0xf]
    %v1522 = vld [vmem:[#allocation7 + $0x174] sm:$0xff]
    %v1523 = vld [vmem:[#allocation7 + $0x17c] sm:$0xf]
    %v1524 = vld [vmem:[#allocation7 + $0x180] sm:$0xff]
    %v1525 = vld [vmem:[#allocation7 + $0x188] sm:$0xf]
    %v1526 = vld [vmem:[#allocation7 + $0x18c] sm:$0xff]
    %v1527 = vld [vmem:[#allocation7 + $0x194] sm:$0xf]
    %v1528 = vld [vmem:[#allocation7 + $0x198] sm:$0xff]
    %v1529 = vld [vmem:[#allocation7 + $0x1a0] sm:$0xf]
    %v1530 = vld [vmem:[#allocation7 + $0x1a4] sm:$0xff]
    %v1531 = vld [vmem:[#allocation7 + $0x1ac] sm:$0xf]
    %v1532 = vld [vmem:[#allocation7 + $0x1b0] sm:$0xff]
    %v1533 = vld [vmem:[#allocation7 + $0x1b8] sm:$0xf]
    %v1534 = vld [vmem:[#allocation7 + $0x1bc] sm:$0xff]
    %v1535 = vld [vmem:[#allocation7 + $0x1c4] sm:$0xf]
    %v1536 = vld [vmem:[#allocation7 + $0x1c8] sm:$0xff]
    %v1537 = vld [vmem:[#allocation7 + $0x1d0] sm:$0xf]
    %v1538 = vld [vmem:[#allocation7 + $0x1d4] sm:$0xff]
    %v1539 = vld [vmem:[#allocation7 + $0x1dc] sm:$0xf]
    %v1540 = vld [vmem:[#allocation7 + $0x1e0] sm:$0xff]
    %v1541 = vld [vmem:[#allocation7 + $0x1e8] sm:$0xf]
    %v1542 = vld [vmem:[#allocation7 + $0x1ec] sm:$0xff]
    %v1543 = vld [vmem:[#allocation7 + $0x1f4] sm:$0xf]
    %v1544 = vld [vmem:[#allocation7 + $0x1f8] sm:$0xff]
    %v1545 = vld [vmem:[#allocation7 + $0x200] sm:$0xf]
    %v1546 = vld [vmem:[#allocation7 + $0x204] sm:$0xff]
    %v1547 = vld [vmem:[#allocation7 + $0x20c] sm:$0xf]
    %v1548 = vld [vmem:[#allocation7 + $0x210] sm:$0xff]
    %v1549 = vld [vmem:[#allocation7 + $0x218] sm:$0xf]
    %v1550 = vld [vmem:[#allocation7 + $0x21c] sm:$0xff]
    %v1551 = vld [vmem:[#allocation7 + $0x224] sm:$0xf]
    %v1552 = vld [vmem:[#allocation7 + $0x228] sm:$0xff]
    %v1553 = vld [vmem:[#allocation7 + $0x230] sm:$0xf]
    %v1554 = vld [vmem:[#allocation7 + $0x234] sm:$0xff]
    %v1555 = vld [vmem:[#allocation7 + $0x23c] sm:$0xf]
    %v1556 = vunpack.c.l.bf16 %v1460
    %v1557 = vunpack.c.h.bf16 %v1460
    %v1558 = vunpack.c.l.bf16 %v1461
    %v1559 = vunpack.c.l.bf16 %v1462
    %v1560 = vunpack.c.h.bf16 %v1462
    %v1561 = vunpack.c.l.bf16 %v1463
    %v1562 = vunpack.c.l.bf16 %v1464
    %v1563 = vunpack.c.h.bf16 %v1464
    %v1564 = vunpack.c.l.bf16 %v1465
    %v1565 = vunpack.c.l.bf16 %v1466
    %v1566 = vunpack.c.h.bf16 %v1466
    %v1567 = vunpack.c.l.bf16 %v1467
    %v1568 = vunpack.c.l.bf16 %v1468
    %v1569 = vunpack.c.h.bf16 %v1468
    %v1570 = vunpack.c.l.bf16 %v1469
    %v1571 = vunpack.c.l.bf16 %v1470
    %v1572 = vunpack.c.h.bf16 %v1470
    %v1573 = vunpack.c.l.bf16 %v1471
    %v1574 = vunpack.c.l.bf16 %v1472
    %v1575 = vunpack.c.h.bf16 %v1472
    %v1576 = vunpack.c.l.bf16 %v1473
    %v1577 = vunpack.c.l.bf16 %v1474
    %v1578 = vunpack.c.h.bf16 %v1474
    %v1579 = vunpack.c.l.bf16 %v1475
    %v1580 = vunpack.c.l.bf16 %v1476
    %v1581 = vunpack.c.h.bf16 %v1476
    %v1582 = vunpack.c.l.bf16 %v1477
    %v1583 = vunpack.c.l.bf16 %v1478
    %v1584 = vunpack.c.h.bf16 %v1478
    %v1585 = vunpack.c.l.bf16 %v1479
    %v1586 = vunpack.c.l.bf16 %v1480
    %v1587 = vunpack.c.h.bf16 %v1480
    %v1588 = vunpack.c.l.bf16 %v1481
    %v1589 = vunpack.c.l.bf16 %v1482
    %v1590 = vunpack.c.h.bf16 %v1482
    %v1591 = vunpack.c.l.bf16 %v1483
    %v1592 = vunpack.c.l.bf16 %v1484
    %v1593 = vunpack.c.h.bf16 %v1484
    %v1594 = vunpack.c.l.bf16 %v1485
    %v1595 = vunpack.c.l.bf16 %v1486
    %v1596 = vunpack.c.h.bf16 %v1486
    %v1597 = vunpack.c.l.bf16 %v1487
    %v1598 = vunpack.c.l.bf16 %v1488
    %v1599 = vunpack.c.h.bf16 %v1488
    %v1600 = vunpack.c.l.bf16 %v1489
    %v1601 = vunpack.c.l.bf16 %v1490
    %v1602 = vunpack.c.h.bf16 %v1490
    %v1603 = vunpack.c.l.bf16 %v1491
    %v1604 = vunpack.c.l.bf16 %v1492
    %v1605 = vunpack.c.h.bf16 %v1492
    %v1606 = vunpack.c.l.bf16 %v1493
    %v1607 = vunpack.c.l.bf16 %v1494
    %v1608 = vunpack.c.h.bf16 %v1494
    %v1609 = vunpack.c.l.bf16 %v1495
    %v1610 = vunpack.c.l.bf16 %v1496
    %v1611 = vunpack.c.h.bf16 %v1496
    %v1612 = vunpack.c.l.bf16 %v1497
    %v1613 = vunpack.c.l.bf16 %v1498
    %v1614 = vunpack.c.h.bf16 %v1498
    %v1615 = vunpack.c.l.bf16 %v1499
    %v1616 = vunpack.c.l.bf16 %v1500
    %v1617 = vunpack.c.h.bf16 %v1500
    %v1618 = vunpack.c.l.bf16 %v1501
    %v1619 = vunpack.c.l.bf16 %v1502
    %v1620 = vunpack.c.h.bf16 %v1502
    %v1621 = vunpack.c.l.bf16 %v1503
    %v1622 = vunpack.c.l.bf16 %v1504
    %v1623 = vunpack.c.h.bf16 %v1504
    %v1624 = vunpack.c.l.bf16 %v1505
    %v1625 = vunpack.c.l.bf16 %v1506
    %v1626 = vunpack.c.h.bf16 %v1506
    %v1627 = vunpack.c.l.bf16 %v1507
    %v1628 = vunpack.c.l.bf16 %v1508
    %v1629 = vunpack.c.h.bf16 %v1508
    %v1630 = vunpack.c.l.bf16 %v1509
    %v1631 = vunpack.c.l.bf16 %v1510
    %v1632 = vunpack.c.h.bf16 %v1510
    %v1633 = vunpack.c.l.bf16 %v1511
    %v1634 = vunpack.c.l.bf16 %v1512
    %v1635 = vunpack.c.h.bf16 %v1512
    %v1636 = vunpack.c.l.bf16 %v1513
    %v1637 = vunpack.c.l.bf16 %v1514
    %v1638 = vunpack.c.h.bf16 %v1514
    %v1639 = vunpack.c.l.bf16 %v1515
    %v1640 = vunpack.c.l.bf16 %v1516
    %v1641 = vunpack.c.h.bf16 %v1516
    %v1642 = vunpack.c.l.bf16 %v1517
    %v1643 = vunpack.c.l.bf16 %v1518
    %v1644 = vunpack.c.h.bf16 %v1518
    %v1645 = vunpack.c.l.bf16 %v1519
    %v1646 = vunpack.c.l.bf16 %v1520
    %v1647 = vunpack.c.h.bf16 %v1520
    %v1648 = vunpack.c.l.bf16 %v1521
    %v1649 = vunpack.c.l.bf16 %v1522
    %v1650 = vunpack.c.h.bf16 %v1522
    %v1651 = vunpack.c.l.bf16 %v1523
    %v1652 = vunpack.c.l.bf16 %v1524
    %v1653 = vunpack.c.h.bf16 %v1524
    %v1654 = vunpack.c.l.bf16 %v1525
    %v1655 = vunpack.c.l.bf16 %v1526
    %v1656 = vunpack.c.h.bf16 %v1526
    %v1657 = vunpack.c.l.bf16 %v1527
    %v1658 = vunpack.c.l.bf16 %v1528
    %v1659 = vunpack.c.h.bf16 %v1528
    %v1660 = vunpack.c.l.bf16 %v1529
    %v1661 = vunpack.c.l.bf16 %v1530
    %v1662 = vunpack.c.h.bf16 %v1530
    %v1663 = vunpack.c.l.bf16 %v1531
    %v1664 = vunpack.c.l.bf16 %v1532
    %v1665 = vunpack.c.h.bf16 %v1532
    %v1666 = vunpack.c.l.bf16 %v1533
    %v1667 = vunpack.c.l.bf16 %v1534
    %v1668 = vunpack.c.h.bf16 %v1534
    %v1669 = vunpack.c.l.bf16 %v1535
    %v1670 = vunpack.c.l.bf16 %v1536
    %v1671 = vunpack.c.h.bf16 %v1536
    %v1672 = vunpack.c.l.bf16 %v1537
    %v1673 = vunpack.c.l.bf16 %v1538
    %v1674 = vunpack.c.h.bf16 %v1538
    %v1675 = vunpack.c.l.bf16 %v1539
    %v1676 = vunpack.c.l.bf16 %v1540
    %v1677 = vunpack.c.h.bf16 %v1540
    %v1678 = vunpack.c.l.bf16 %v1541
    %v1679 = vunpack.c.l.bf16 %v1542
    %v1680 = vunpack.c.h.bf16 %v1542
    %v1681 = vunpack.c.l.bf16 %v1543
    %v1682 = vunpack.c.l.bf16 %v1544
    %v1683 = vunpack.c.h.bf16 %v1544
    %v1684 = vunpack.c.l.bf16 %v1545
    %v1685 = vunpack.c.l.bf16 %v1546
    %v1686 = vunpack.c.h.bf16 %v1546
    %v1687 = vunpack.c.l.bf16 %v1547
    %v1688 = vunpack.c.l.bf16 %v1548
    %v1689 = vunpack.c.h.bf16 %v1548
    %v1690 = vunpack.c.l.bf16 %v1549
    %v1691 = vunpack.c.l.bf16 %v1550
    %v1692 = vunpack.c.h.bf16 %v1550
    %v1693 = vunpack.c.l.bf16 %v1551
    %v1694 = vunpack.c.l.bf16 %v1552
    %v1695 = vunpack.c.h.bf16 %v1552
    %v1696 = vunpack.c.l.bf16 %v1553
    %v1697 = vunpack.c.l.bf16 %v1554
    %v1698 = vunpack.c.h.bf16 %v1554
    %v1699 = vunpack.c.l.bf16 %v1555
    %1700 = vmatpush.msra.mxu0 %v1601
    %1701 = vmatpush.msra.mxu0 %v1598
    %1702 = vmatpush.msra.mxu0 %v1595
    %1703 = vmatpush.msra.mxu0 %v1592
    %1704 = vmatpush.msra.mxu0 %v1589
    %1705 = vmatpush.msra.mxu0 %v1586
    %1706 = vmatpush.msra.mxu0 %v1583
    %1707 = vmatpush.msra.mxu0 %v1580
    %1708 = vmatpush.msra.mxu0 %v1577
    %1709 = vmatpush.msra.mxu0 %v1574
    %1710 = vmatpush.msra.mxu0 %v1571
    %1711 = vmatpush.msra.mxu0 %v1568
    %1712 = vmatpush.msra.mxu0 %v1565
    %1713 = vmatpush.msra.mxu0 %v1562
    %1714 = vmatpush.msra.mxu0 %v1559
    %1715 = vmatpush.msra.mxu0 %v1556
    %1716 = vmatmul.f32.gmra.mxu0 %v1457
    %v1717 = vpop.f32.mrf.mxu0
    %v1718 = vadd.f32 0.0, %v1717
    %1719 = vdwg.mxu0
    %1720 = vmatpush.msra.mxu0 %v1649
    %1721 = vmatpush.msra.mxu0 %v1646
    %1722 = vmatpush.msra.mxu0 %v1643
    %1723 = vmatpush.msra.mxu0 %v1640
    %1724 = vmatpush.msra.mxu0 %v1637
    %1725 = vmatpush.msra.mxu0 %v1634
    %1726 = vmatpush.msra.mxu0 %v1631
    %1727 = vmatpush.msra.mxu0 %v1628
    %1728 = vmatpush.msra.mxu0 %v1625
    %1729 = vmatpush.msra.mxu0 %v1622
    %1730 = vmatpush.msra.mxu0 %v1619
    %1731 = vmatpush.msra.mxu0 %v1616
    %1732 = vmatpush.msra.mxu0 %v1613
    %1733 = vmatpush.msra.mxu0 %v1610
    %1734 = vmatpush.msra.mxu0 %v1607
    %1735 = vmatpush.msra.mxu0 %v1604
    %1736 = vmatmul.f32.gmra.mxu0 %v1458
    %v1737 = vpop.f32.mrf.mxu0
    %v1738 = vadd.f32 %v1718, %v1737
    %1739 = vdwg.mxu0
    %1740 = vmatpush.msra.mxu0 %v1697
    %1741 = vmatpush.msra.mxu0 %v1694
    %1742 = vmatpush.msra.mxu0 %v1691
    %1743 = vmatpush.msra.mxu0 %v1688
    %1744 = vmatpush.msra.mxu0 %v1685
    %1745 = vmatpush.msra.mxu0 %v1682
    %1746 = vmatpush.msra.mxu0 %v1679
    %1747 = vmatpush.msra.mxu0 %v1676
    %1748 = vmatpush.msra.mxu0 %v1673
    %1749 = vmatpush.msra.mxu0 %v1670
    %1750 = vmatpush.msra.mxu0 %v1667
    %1751 = vmatpush.msra.mxu0 %v1664
    %1752 = vmatpush.msra.mxu0 %v1661
    %1753 = vmatpush.msra.mxu0 %v1658
    %1754 = vmatpush.msra.mxu0 %v1655
    %1755 = vmatpush.msra.mxu0 %v1652
    %1756 = vmatmul.f32.gmra.mxu0 %v1459
    %v1757 = vpop.f32.mrf.mxu0
    %v1758 = vadd.f32 %v1738, %v1757
    %1759 = vdwg.mxu0
    %1760 = vmatpush.msra.mxu0 %v1602
    %1761 = vmatpush.msra.mxu0 %v1599
    %1762 = vmatpush.msra.mxu0 %v1596
    %1763 = vmatpush.msra.mxu0 %v1593
    %1764 = vmatpush.msra.mxu0 %v1590
    %1765 = vmatpush.msra.mxu0 %v1587
    %1766 = vmatpush.msra.mxu0 %v1584
    %1767 = vmatpush.msra.mxu0 %v1581
    %1768 = vmatpush.msra.mxu0 %v1578
    %1769 = vmatpush.msra.mxu0 %v1575
    %1770 = vmatpush.msra.mxu0 %v1572
    %1771 = vmatpush.msra.mxu0 %v1569
    %1772 = vmatpush.msra.mxu0 %v1566
    %1773 = vmatpush.msra.mxu0 %v1563
    %1774 = vmatpush.msra.mxu0 %v1560
    %1775 = vmatpush.msra.mxu0 %v1557
    %1776 = vmatmul.f32.gmra.mxu0 %v1457
    %v1777 = vpop.f32.mrf.mxu0
    %v1778 = vadd.f32 0.0, %v1777
    %1779 = vdwg.mxu0
    %1780 = vmatpush.msra.mxu0 %v1650
    %1781 = vmatpush.msra.mxu0 %v1647
    %1782 = vmatpush.msra.mxu0 %v1644
    %1783 = vmatpush.msra.mxu0 %v1641
    %1784 = vmatpush.msra.mxu0 %v1638
    %1785 = vmatpush.msra.mxu0 %v1635
    %1786 = vmatpush.msra.mxu0 %v1632
    %1787 = vmatpush.msra.mxu0 %v1629
    %1788 = vmatpush.msra.mxu0 %v1626
    %1789 = vmatpush.msra.mxu0 %v1623
    %1790 = vmatpush.msra.mxu0 %v1620
    %1791 = vmatpush.msra.mxu0 %v1617
    %1792 = vmatpush.msra.mxu0 %v1614
    %1793 = vmatpush.msra.mxu0 %v1611
    %1794 = vmatpush.msra.mxu0 %v1608
    %1795 = vmatpush.msra.mxu0 %v1605
    %1796 = vmatmul.f32.gmra.mxu0 %v1458
    %v1797 = vpop.f32.mrf.mxu0
    %v1798 = vadd.f32 %v1778, %v1797
    %1799 = vdwg.mxu0
    %1800 = vmatpush.msra.mxu0 %v1698
    %1801 = vmatpush.msra.mxu0 %v1695
    %1802 = vmatpush.msra.mxu0 %v1692
    %1803 = vmatpush.msra.mxu0 %v1689
    %1804 = vmatpush.msra.mxu0 %v1686
    %1805 = vmatpush.msra.mxu0 %v1683
    %1806 = vmatpush.msra.mxu0 %v1680
    %1807 = vmatpush.msra.mxu0 %v1677
    %1808 = vmatpush.msra.mxu0 %v1674
    %1809 = vmatpush.msra.mxu0 %v1671
    %1810 = vmatpush.msra.mxu0 %v1668
    %1811 = vmatpush.msra.mxu0 %v1665
    %1812 = vmatpush.msra.mxu0 %v1662
    %1813 = vmatpush.msra.mxu0 %v1659
    %1814 = vmatpush.msra.mxu0 %v1656
    %1815 = vmatpush.msra.mxu0 %v1653
    %1816 = vmatmul.f32.gmra.mxu0 %v1459
    %v1817 = vpop.f32.mrf.mxu0
    %v1818 = vadd.f32 %v1798, %v1817
    %1819 = vdwg.mxu0
    %1820 = vmatpush.msra.mxu0 %v1603
    %1821 = vmatpush.msra.mxu0 %v1600
    %1822 = vmatpush.msra.mxu0 %v1597
    %1823 = vmatpush.msra.mxu0 %v1594
    %1824 = vmatpush.msra.mxu0 %v1591
    %1825 = vmatpush.msra.mxu0 %v1588
    %1826 = vmatpush.msra.mxu0 %v1585
    %1827 = vmatpush.msra.mxu0 %v1582
    %1828 = vmatpush.msra.mxu0 %v1579
    %1829 = vmatpush.msra.mxu0 %v1576
    %1830 = vmatpush.msra.mxu0 %v1573
    %1831 = vmatpush.msra.mxu0 %v1570
    %1832 = vmatpush.msra.mxu0 %v1567
    %1833 = vmatpush.msra.mxu0 %v1564
    %1834 = vmatpush.msra.mxu0 %v1561
    %1835 = vmatpush.msra.mxu0 %v1558
    %1836 = vmatmul.f32.gmra.mxu0 %v1457
    %v1837 = vpop.f32.mrf.mxu0
    %v1838 = vadd.f32 0.0, %v1837
    %1839 = vdwg.mxu0
    %1840 = vmatpush.msra.mxu0 %v1651
    %1841 = vmatpush.msra.mxu0 %v1648
    %1842 = vmatpush.msra.mxu0 %v1645
    %1843 = vmatpush.msra.mxu0 %v1642
    %1844 = vmatpush.msra.mxu0 %v1639
    %1845 = vmatpush.msra.mxu0 %v1636
    %1846 = vmatpush.msra.mxu0 %v1633
    %1847 = vmatpush.msra.mxu0 %v1630
    %1848 = vmatpush.msra.mxu0 %v1627
    %1849 = vmatpush.msra.mxu0 %v1624
    %1850 = vmatpush.msra.mxu0 %v1621
    %1851 = vmatpush.msra.mxu0 %v1618
    %1852 = vmatpush.msra.mxu0 %v1615
    %1853 = vmatpush.msra.mxu0 %v1612
    %1854 = vmatpush.msra.mxu0 %v1609
    %1855 = vmatpush.msra.mxu0 %v1606
    %1856 = vmatmul.f32.gmra.mxu0 %v1458
    %v1857 = vpop.f32.mrf.mxu0
    %v1858 = vadd.f32 %v1838, %v1857
    %1859 = vdwg.mxu0
    %1860 = vmatpush.msra.mxu0 %v1699
    %1861 = vmatpush.msra.mxu0 %v1696
    %1862 = vmatpush.msra.mxu0 %v1693
    %1863 = vmatpush.msra.mxu0 %v1690
    %1864 = vmatpush.msra.mxu0 %v1687
    %1865 = vmatpush.msra.mxu0 %v1684
    %1866 = vmatpush.msra.mxu0 %v1681
    %1867 = vmatpush.msra.mxu0 %v1678
    %1868 = vmatpush.msra.mxu0 %v1675
    %1869 = vmatpush.msra.mxu0 %v1672
    %1870 = vmatpush.msra.mxu0 %v1669
    %1871 = vmatpush.msra.mxu0 %v1666
    %1872 = vmatpush.msra.mxu0 %v1663
    %1873 = vmatpush.msra.mxu0 %v1660
    %1874 = vmatpush.msra.mxu0 %v1657
    %1875 = vmatpush.msra.mxu0 %v1654
    %1876 = vmatmul.f32.gmra.mxu0 %v1459
    %v1877 = vpop.f32.mrf.mxu0
    %v1878 = vadd.f32 %v1858, %v1877
    %1879 = vdwg.mxu0
    %v1880 = vmul.f32 %v1457, %v1457
    %v1881 = vmul.f32 %v1458, %v1458
    %v1882 = vmul.f32 %v1459, %v1459
    %v1883 = vsel %vm1264, %v1880, 0.0
    %v1884 = vsel %vm1264, %v1881, 0.0
    %v1885 = vadd.f32 %v1883, %v1884
    %v1886 = vsel %vm1264, %v1882, 0.0
    %v1887 = vadd.f32 %v1885, %v1886
    %1888 = vadd.xlane.f32.xlu0 %v1887
    %v1889 = vpop.xlane.xlu0 %1888
    %v1890 = vrsqrt.pop %v1889
    %v1891 = vmul.f32 %v1890, %v1889
    %v1892 = vmul.f32 %v1891, %v1890
    %v1893 = vmul.f32 0.5, %v1892
    %v1894 = vsub.f32 1.5, %v1893
    %v1895 = vmul.f32 %v1890, %v1894
    %v1896 = vmul.f32 %v1889, %v1895
    %vm1897 = vcmp.eq.f32.partialorder %v1889, inf
    %v1898 = vsel %vm1897, %v1889, %v1896
    %vm1899 = vcmp.eq.f32.partialorder %v1889, 0.0
    %v1900 = vand.u32 %v1889, 2147483648
    %v1901 = vsel %vm1899, %v1900, %v1898
    %v1902 = vperm.slane %v97, 1
    %v1903 = vperm.slane %v98, 1
    %v1904 = vperm.slane %v99, 1
    %v1905 = vmul.f32 %v1901, %v1902
    %v1906 = vmul.f32 %v1901, %v1903
    %v1907 = vmul.f32 %v1901, %v1904
    %v1908 = vadd.f32 %v1905, 1e-08
    %v1909 = vadd.f32 %v1906, 1e-08
    %v1910 = vadd.f32 %v1907, 1e-08
    %v1911 = vrcp.pop %v1908
    %v1912 = vmul.f32 %v1908, %v1911
    %v1913 = vsub.f32 1.0, %v1912
    %v1914 = vmul.f32 %v1911, %v1913
    %v1915 = vadd.f32 %v1911, %v1914
    %vm1916 = vweird.f32 %v1908
    %vm1917 = vweird.f32 %v1911
    %vm1918 = vmor %vm1916, %vm1917
    %v1919 = vsel %vm1918, %v1911, %v1915
    %v1920 = vand.u32 2147483647, %v1908
    %vm1921 = vcmp.eq.f32.partialorder %v1920, 8.507059e+37
    %v1922 = vand.u32 %v1908, 2147483648
    %v1923 = vor.u32 1.1754944e-38, %v1922
    %v1924 = vsel %vm1921, %v1923, %v1919
    %v1925 = vrcp.pop %v1909
    %v1926 = vmul.f32 %v1909, %v1925
    %v1927 = vsub.f32 1.0, %v1926
    %v1928 = vmul.f32 %v1925, %v1927
    %v1929 = vadd.f32 %v1925, %v1928
    %vm1930 = vweird.f32 %v1909
    %vm1931 = vweird.f32 %v1925
    %vm1932 = vmor %vm1930, %vm1931
    %v1933 = vsel %vm1932, %v1925, %v1929
    %v1934 = vand.u32 2147483647, %v1909
    %vm1935 = vcmp.eq.f32.partialorder %v1934, 8.507059e+37
    %v1936 = vand.u32 %v1909, 2147483648
    %v1937 = vor.u32 1.1754944e-38, %v1936
    %v1938 = vsel %vm1935, %v1937, %v1933
    %v1939 = vrcp.pop %v1910
    %v1940 = vmul.f32 %v1910, %v1939
    %v1941 = vsub.f32 1.0, %v1940
    %v1942 = vmul.f32 %v1939, %v1941
    %v1943 = vadd.f32 %v1939, %v1942
    %vm1944 = vweird.f32 %v1910
    %vm1945 = vweird.f32 %v1939
    %vm1946 = vmor %vm1944, %vm1945
    %v1947 = vsel %vm1946, %v1939, %v1943
    %v1948 = vand.u32 2147483647, %v1910
    %vm1949 = vcmp.eq.f32.partialorder %v1948, 8.507059e+37
    %v1950 = vand.u32 %v1910, 2147483648
    %v1951 = vor.u32 1.1754944e-38, %v1950
    %v1952 = vsel %vm1949, %v1951, %v1947
    %v1953 = vmul.f32 %v1758, %v1924
    %v1954 = vmul.f32 %v1818, %v1938
    %v1955 = vmul.f32 %v1878, %v1952
    %v1956 = vmax.f32 %v1953, 0.0
    %v1957 = vmax.f32 %v1954, 0.0
    %v1958 = vmax.f32 %v1955, 0.0
    %v1959 = vsel %vm1264, %v1956, 0.0
    %v1960 = vrot.slane %v1959, 4
    %v1961 = vadd.f32 %v1959, %v1960
    %v1962 = vrot.slane %v1961, 2
    %v1963 = vadd.f32 %v1961, %v1962
    %v1964 = vrot.slane %v1963, 1
    %v1965 = vadd.f32 %v1963, %v1964
    %v1966 = vsel %vm1264, %v1957, 0.0
    %v1967 = vrot.slane %v1966, 4
    %v1968 = vadd.f32 %v1966, %v1967
    %v1969 = vrot.slane %v1968, 2
    %v1970 = vadd.f32 %v1968, %v1969
    %v1971 = vrot.slane %v1970, 1
    %v1972 = vadd.f32 %v1970, %v1971
    %v1973 = vsel %vm1264, %v1958, 0.0
    %v1974 = vrot.slane %v1973, 4
    %v1975 = vadd.f32 %v1973, %v1974
    %v1976 = vrot.slane %v1975, 2
    %v1977 = vadd.f32 %v1975, %v1976
    %v1978 = vrot.slane %v1977, 1
    %v1979 = vadd.f32 %v1977, %v1978
    %v1980 = vmul.f32 %v1965, %v1378
    %v1981 = vmul.f32 %v1972, %v1378
    %v1982 = vmul.f32 %v1979, %v1378
    %v1983 = vsub.f32 %v1956, %v1980
    %v1984 = vsub.f32 %v1957, %v1981
    %v1985 = vsub.f32 %v1958, %v1982
    %v1986 = vmul.f32 %v1983, %v1983
    %v1987 = vmul.f32 %v1984, %v1984
    %v1988 = vmul.f32 %v1985, %v1985
    %v1989 = vsel %vm1264, %v1986, 0.0
    %v1990 = vrot.slane %v1989, 4
    %v1991 = vadd.f32 %v1989, %v1990
    %v1992 = vrot.slane %v1991, 2
    %v1993 = vadd.f32 %v1991, %v1992
    %v1994 = vrot.slane %v1993, 1
    %v1995 = vadd.f32 %v1993, %v1994
    %v1996 = vsel %vm1264, %v1987, 0.0
    %v1997 = vrot.slane %v1996, 4
    %v1998 = vadd.f32 %v1996, %v1997
    %v1999 = vrot.slane %v1998, 2
    %v2000 = vadd.f32 %v1998, %v1999
    %v2001 = vrot.slane %v2000, 1
    %v2002 = vadd.f32 %v2000, %v2001
    %v2003 = vsel %vm1264, %v1988, 0.0
    %v2004 = vrot.slane %v2003, 4
    %v2005 = vadd.f32 %v2003, %v2004
    %v2006 = vrot.slane %v2005, 2
    %v2007 = vadd.f32 %v2005, %v2006
    %v2008 = vrot.slane %v2007, 1
    %v2009 = vadd.f32 %v2007, %v2008
    %v2010 = vmul.f32 %v1995, %v1378
    %v2011 = vmul.f32 %v2002, %v1378
    %v2012 = vmul.f32 %v2009, %v1378
    %v2013 = vadd.f32 %v2010, 1e-05
    %v2014 = vadd.f32 %v2011, 1e-05
    %v2015 = vadd.f32 %v2012, 1e-05
    %v2016 = vrsqrt.pop %v2013
    %v2017 = vmul.f32 %v2016, %v2013
    %v2018 = vmul.f32 %v2017, %v2016
    %v2019 = vmul.f32 0.5, %v2018
    %v2020 = vsub.f32 1.5, %v2019
    %v2021 = vmul.f32 %v2016, %v2020
    %vm2022 = vweird.f32 %v2013
    %vm2023 = vweird.f32 %v2016
    %vm2024 = vmor %vm2022, %vm2023
    %v2025 = vsel %vm2024, %v2016, %v2021
    %v2026 = vrsqrt.pop %v2014
    %v2027 = vmul.f32 %v2026, %v2014
    %v2028 = vmul.f32 %v2027, %v2026
    %v2029 = vmul.f32 0.5, %v2028
    %v2030 = vsub.f32 1.5, %v2029
    %v2031 = vmul.f32 %v2026, %v2030
    %vm2032 = vweird.f32 %v2014
    %vm2033 = vweird.f32 %v2026
    %vm2034 = vmor %vm2032, %vm2033
    %v2035 = vsel %vm2034, %v2026, %v2031
    %v2036 = vrsqrt.pop %v2015
    %v2037 = vmul.f32 %v2036, %v2015
    %v2038 = vmul.f32 %v2037, %v2036
    %v2039 = vmul.f32 0.5, %v2038
    %v2040 = vsub.f32 1.5, %v2039
    %v2041 = vmul.f32 %v2036, %v2040
    %vm2042 = vweird.f32 %v2015
    %vm2043 = vweird.f32 %v2036
    %vm2044 = vmor %vm2042, %vm2043
    %v2045 = vsel %vm2044, %v2036, %v2041
    %v2046 = vmul.f32 %v1983, %v2025
    %v2047 = vmul.f32 %v1984, %v2035
    %v2048 = vmul.f32 %v1985, %v2045
    %v2049 = vperm.slane %v97, 4
    %v2050 = vperm.slane %v98, 4
    %v2051 = vperm.slane %v99, 4
    %v2052 = vmul.f32 %v2046, %v2049
    %v2053 = vmul.f32 %v2047, %v2050
    %v2054 = vmul.f32 %v2048, %v2051
    %v2055 = vperm.slane %v97, 5
    %v2056 = vperm.slane %v98, 5
    %v2057 = vperm.slane %v99, 5
    %v2058 = vadd.f32 %v2052, %v2055
    %v2059 = vadd.f32 %v2053, %v2056
    %v2060 = vadd.f32 %v2054, %v2057
    %v2061 = vld [vmem:[#allocation8] sm:$0xff]
    %v2062 = vld [vmem:[#allocation8 + $0x8] sm:$0xff]
    %v2063 = vld [vmem:[#allocation8 + $0x10] sm:$0xff]
    %v2064 = vld [vmem:[#allocation8 + $0x18] sm:$0xff]
    %v2065 = vld [vmem:[#allocation8 + $0x20] sm:$0xff]
    %v2066 = vld [vmem:[#allocation8 + $0x28] sm:$0xff]
    %v2067 = vld [vmem:[#allocation8 + $0x30] sm:$0xff]
    %v2068 = vld [vmem:[#allocation8 + $0x38] sm:$0xff]
    %v2069 = vld [vmem:[#allocation8 + $0x40] sm:$0xff]
    %v2070 = vld [vmem:[#allocation8 + $0x48] sm:$0xff]
    %v2071 = vld [vmem:[#allocation8 + $0x50] sm:$0xff]
    %v2072 = vld [vmem:[#allocation8 + $0x58] sm:$0xff]
    %v2073 = vld [vmem:[#allocation8 + $0x60] sm:$0xff]
    %v2074 = vld [vmem:[#allocation8 + $0x68] sm:$0xff]
    %v2075 = vld [vmem:[#allocation8 + $0x70] sm:$0xff]
    %v2076 = vld [vmem:[#allocation8 + $0x78] sm:$0xff]
    %v2077 = vld [vmem:[#allocation8 + $0x80] sm:$0xff]
    %v2078 = vld [vmem:[#allocation8 + $0x88] sm:$0xff]
    %v2079 = vld [vmem:[#allocation8 + $0x90] sm:$0xff]
    %v2080 = vld [vmem:[#allocation8 + $0x98] sm:$0xff]
    %v2081 = vld [vmem:[#allocation8 + $0xa0] sm:$0xff]
    %v2082 = vld [vmem:[#allocation8 + $0xa8] sm:$0xff]
    %v2083 = vld [vmem:[#allocation8 + $0xb0] sm:$0xff]
    %v2084 = vld [vmem:[#allocation8 + $0xb8] sm:$0xff]
    %v2085 = vld [vmem:[#allocation8 + $0xc0] sm:$0xff]
    %v2086 = vld [vmem:[#allocation8 + $0xc8] sm:$0xff]
    %v2087 = vld [vmem:[#allocation8 + $0xd0] sm:$0xff]
    %v2088 = vld [vmem:[#allocation8 + $0xd8] sm:$0xff]
    %v2089 = vld [vmem:[#allocation8 + $0xe0] sm:$0xff]
    %v2090 = vld [vmem:[#allocation8 + $0xe8] sm:$0xff]
    %v2091 = vld [vmem:[#allocation8 + $0xf0] sm:$0xff]
    %v2092 = vld [vmem:[#allocation8 + $0xf8] sm:$0xff]
    %v2093 = vld [vmem:[#allocation8 + $0x100] sm:$0xff]
    %v2094 = vld [vmem:[#allocation8 + $0x108] sm:$0xff]
    %v2095 = vld [vmem:[#allocation8 + $0x110] sm:$0xff]
    %v2096 = vld [vmem:[#allocation8 + $0x118] sm:$0xff]
    %v2097 = vld [vmem:[#allocation8 + $0x120] sm:$0xff]
    %v2098 = vld [vmem:[#allocation8 + $0x128] sm:$0xff]
    %v2099 = vld [vmem:[#allocation8 + $0x130] sm:$0xff]
    %v2100 = vld [vmem:[#allocation8 + $0x138] sm:$0xff]
    %v2101 = vld [vmem:[#allocation8 + $0x140] sm:$0xff]
    %v2102 = vld [vmem:[#allocation8 + $0x148] sm:$0xff]
    %v2103 = vld [vmem:[#allocation8 + $0x150] sm:$0xff]
    %v2104 = vld [vmem:[#allocation8 + $0x158] sm:$0xff]
    %v2105 = vld [vmem:[#allocation8 + $0x160] sm:$0xff]
    %v2106 = vld [vmem:[#allocation8 + $0x168] sm:$0xff]
    %v2107 = vld [vmem:[#allocation8 + $0x170] sm:$0xff]
    %v2108 = vld [vmem:[#allocation8 + $0x178] sm:$0xff]
    %2109 = vmatpush.msra.mxu0 %v2076
    %2110 = vmatpush.msra.mxu0 %v2075
    %2111 = vmatpush.msra.mxu0 %v2074
    %2112 = vmatpush.msra.mxu0 %v2073
    %2113 = vmatpush.msra.mxu0 %v2072
    %2114 = vmatpush.msra.mxu0 %v2071
    %2115 = vmatpush.msra.mxu0 %v2070
    %2116 = vmatpush.msra.mxu0 %v2069
    %2117 = vmatpush.msra.mxu0 %v2068
    %2118 = vmatpush.msra.mxu0 %v2067
    %2119 = vmatpush.msra.mxu0 %v2066
    %2120 = vmatpush.msra.mxu0 %v2065
    %2121 = vmatpush.msra.mxu0 %v2064
    %2122 = vmatpush.msra.mxu0 %v2063
    %2123 = vmatpush.msra.mxu0 %v2062
    %2124 = vmatpush.msra.mxu0 %v2061
    %2125 = vmatmul.f32.gmra.mxu0 %v2058
    %v2126 = vpop.f32.mrf.mxu0
    %v2127 = vadd.f32 0.0, %v2126
    %2128 = vdwg.mxu0
    %2129 = vmatpush.msra.mxu0 %v2092
    %2130 = vmatpush.msra.mxu0 %v2091
    %2131 = vmatpush.msra.mxu0 %v2090
    %2132 = vmatpush.msra.mxu0 %v2089
    %2133 = vmatpush.msra.mxu0 %v2088
    %2134 = vmatpush.msra.mxu0 %v2087
    %2135 = vmatpush.msra.mxu0 %v2086
    %2136 = vmatpush.msra.mxu0 %v2085
    %2137 = vmatpush.msra.mxu0 %v2084
    %2138 = vmatpush.msra.mxu0 %v2083
    %2139 = vmatpush.msra.mxu0 %v2082
    %2140 = vmatpush.msra.mxu0 %v2081
    %2141 = vmatpush.msra.mxu0 %v2080
    %2142 = vmatpush.msra.mxu0 %v2079
    %2143 = vmatpush.msra.mxu0 %v2078
    %2144 = vmatpush.msra.mxu0 %v2077
    %2145 = vmatmul.f32.gmra.mxu0 %v2059
    %v2146 = vpop.f32.mrf.mxu0
    %v2147 = vadd.f32 %v2127, %v2146
    %2148 = vdwg.mxu0
    %2149 = vmatpush.msra.mxu0 %v2108
    %2150 = vmatpush.msra.mxu0 %v2107
    %2151 = vmatpush.msra.mxu0 %v2106
    %2152 = vmatpush.msra.mxu0 %v2105
    %2153 = vmatpush.msra.mxu0 %v2104
    %2154 = vmatpush.msra.mxu0 %v2103
    %2155 = vmatpush.msra.mxu0 %v2102
    %2156 = vmatpush.msra.mxu0 %v2101
    %2157 = vmatpush.msra.mxu0 %v2100
    %2158 = vmatpush.msra.mxu0 %v2099
    %2159 = vmatpush.msra.mxu0 %v2098
    %2160 = vmatpush.msra.mxu0 %v2097
    %2161 = vmatpush.msra.mxu0 %v2096
    %2162 = vmatpush.msra.mxu0 %v2095
    %2163 = vmatpush.msra.mxu0 %v2094
    %2164 = vmatpush.msra.mxu0 %v2093
    %2165 = vmatmul.f32.gmra.mxu0 %v2060
    %v2166 = vpop.f32.mrf.mxu0
    %v2167 = vadd.f32 %v2147, %v2166
    %2168 = vdwg.mxu0
    %2169 = vst [vmem:[#allocation11] sm:$0x3] %v2167
    // Predicated region
    $region42: #{tpu_custom_call.1} parent=1 // pred_check
      _
    $region43: #{tpu_custom_call.1} parent=1 // pred_check_branch
      %2171 = sbr.rel (0) target = $region45
    $region44: #{tpu_custom_call.1} parent=1 // pred_region
      %2173 = vsyncadd [#allocation4], 0
      %s2175 = sshll.u32 [#allocation11], 4
      %s2176 = int_to_ptr.vmem [resolvable:$true] %s2175
      %s2177 = sshll.u32 %s5, 4
      %s2178 = int_to_ptr.hbm [resolvable:$true] %s2177
      %2180 = dma.vmem_to_hbm [thread:$0]  %s2176, 32, %s2178, [#allocation4]
    $region45: #{tpu_custom_call.1} parent=1 // pred_fallthru
      _
    // Predicated region
    $region46: #{tpu_custom_call.1} parent=1 // pred_check
      _
    $region47: #{tpu_custom_call.1} parent=1 // pred_check_branch
      %2182 = sbr.rel (0) target = $region49
    $region48: #{tpu_custom_call.1} parent=1 // pred_region
      %2184 = dma.done [#allocation4], 32
    $region49: #{tpu_custom_call.1} parent=1 // pred_fallthru
      _
    %2185 = vsyncpa [#allocation3], 1
    %2186 = vsyncpa [#allocation6], 1
    %2187 = vsyncpa [#allocation9], 1
    %2188 = vsyncpa [#allocation4], 1

</llo_original>
